<compile_context>
chip_gen: v7x
topology: tpu7x:2x2x1
jax: 0.10.0
libtpu: 0.0.40
codegen_flags: <defaults>
</compile_context>

<pallas_src>
import functools

import jax
import jax.numpy as jnp
from jax.experimental import pallas as pl
from jax.experimental.pallas import tpu as pltpu


# ---------------------------------------------------------------------------
# Hardware-aware sizing helpers
# ---------------------------------------------------------------------------
def _round_up(x: int, m: int) -> int:
    return (x + m - 1) // m * m


@functools.lru_cache(maxsize=1)
def _vmem_capacity_bytes() -> int:
    try:
        info = pltpu.get_tpu_info()
        cap = int(getattr(info, "vmem_capacity_bytes", 0) or 0)
        if cap > 0:
            return cap
    except Exception:
        pass
    return 128 * 1024 * 1024  # v5e / v6e physical VMEM


def _vmem_limit_bytes() -> int:
    cap = _vmem_capacity_bytes()
    # ~105 MiB on 128-MiB parts, ~52 MiB on v7x's 64-MiB parts (headroom kept).
    return max(32 * 1024 * 1024, min(int(cap * 0.82), cap - (8 << 20)))


def _pick_kv_tile(sk: int, dim_in: int, dim_k: int, vmem_limit: int) -> int:
    """Sk-tile for the K/V projection kernel (multiple of 128 or full Sk)."""
    per_row = (2 * 2 * dim_in * 4      # key + value tiles, f32, double-buffered
               + 2 * 2 * dim_k * 2     # kt + v output tiles, bf16, double-buffered
               + 4 * dim_k * 4)        # live f32 projection temporaries
    budget = max(vmem_limit - (8 << 20), 128 * per_row)
    if sk <= 512 or sk * per_row <= budget:
        return sk
    for ts in (512, 256, 128):
        if sk % ts == 0 and ts * per_row <= budget:
            return ts
    # TODO(synk): very long Sk not divisible by 128 falls back to one tile.
    return sk


def _pick_q_tile(sq: int, sk: int, dim_in: int, dim_k: int,
                 mask_itemsize: int, vmem_limit: int) -> int:
    """Query-row tile (multiple of 8, <=512) bounded by the VMEM budget."""
    # Resident (not scaling with tq): bf16 K^T + V double-buffered + weights.
    fixed = (2 * dim_k * sk * 2) * 2 + 2 * (dim_in * dim_k * 2 + dim_k * 4)
    per_row = (2 * dim_in * 4          # q_in tile (f32, double-buffered)
               + 2 * dim_k * 4         # out tile
               + 2 * sk * 4            # attn tile (f32 writeback)
               + 3 * sk * 4            # scores / exp / p live f32
               + dim_k * 4)            # projected q
    if mask_itemsize:
        per_row += 2 * sk * mask_itemsize
    budget = max(vmem_limit - fixed - (4 << 20), 8 * per_row)
    tq = min(512, budget // per_row)
    tq = max(8, (int(tq) // 8) * 8)
    return min(tq, _round_up(sq, 8))


# ---------------------------------------------------------------------------
# Kernel 1: per-batch / per-Sk-tile K & V projections  ->  bf16 K^T and V
# ---------------------------------------------------------------------------
def _kv_project_kernel(key_ref, value_ref, wk_ref, bk_ref, wv_ref, bv_ref,
                       kt_ref, v_ref):
    k = jnp.dot(key_ref[...].astype(jnp.bfloat16), wk_ref[...],
                preferred_element_type=jnp.float32) + bk_ref[...]
    v = jnp.dot(value_ref[...].astype(jnp.bfloat16), wv_ref[...],
                preferred_element_type=jnp.float32) + bv_ref[...]
    # Store K pre-transposed so the attention kernel's q @ k^T is a plain MXU
    # matmul (transpose happens once per Sk tile, not per query tile) and the
    # K stream is lane-dense along Sk.
    kt_ref[...] = k.T.astype(jnp.bfloat16)
    v_ref[...] = v.astype(jnp.bfloat16)


def _project_kv(key, value, wk_b, bk2, wv_b, bv2, ts, vmem_limit):
    B, Sk, dim_in = key.shape
    dim_k = wk_b.shape[1]
    n_st = Sk // ts

    grid_spec = pltpu.PrefetchScalarGridSpec(
        num_scalar_prefetch=0,
        grid=(B, n_st),
        in_specs=[
            pl.BlockSpec((pl.Squeezed(), ts, dim_in), lambda b, s: (b, s, 0)),
            pl.BlockSpec((pl.Squeezed(), ts, dim_in), lambda b, s: (b, s, 0)),
            pl.BlockSpec((dim_in, dim_k), lambda b, s: (0, 0)),
            pl.BlockSpec((1, dim_k), lambda b, s: (0, 0)),
            pl.BlockSpec((dim_in, dim_k), lambda b, s: (0, 0)),
            pl.BlockSpec((1, dim_k), lambda b, s: (0, 0)),
        ],
        out_specs=[
            pl.BlockSpec((pl.Squeezed(), dim_k, ts), lambda b, s: (b, 0, s)),
            pl.BlockSpec((pl.Squeezed(), ts, dim_k), lambda b, s: (b, s, 0)),
        ],
    )
    return pl.pallas_call(
        _kv_project_kernel,
        out_shape=(jax.ShapeDtypeStruct((B, dim_k, Sk), jnp.bfloat16),
                   jax.ShapeDtypeStruct((B, Sk, dim_k), jnp.bfloat16)),
        grid_spec=grid_spec,
        compiler_params=pltpu.CompilerParams(
            dimension_semantics=("parallel", "parallel"),
            vmem_limit_bytes=vmem_limit),
    )(key, value, wk_b, bk2, wv_b, bv2)


# ---------------------------------------------------------------------------
# Kernel 2: fused Q projection + scaled-dot-product attention
# ---------------------------------------------------------------------------
def _build_attn_kernel(dim_q: int, has_mask: bool):
    inv_scale = 1.0 / (float(dim_q) ** 0.5)
    neg_big = -1000000000.0 * inv_scale  # mask bias, pre-divided by sqrt(dim_q)

    def kernel(*refs):
        if has_mask:
            (q_in_ref, kt_ref, v_ref, mask_ref, wq_ref, bq_ref,
             out_ref, attn_ref) = refs
        else:
            (q_in_ref, kt_ref, v_ref, wq_ref, bq_ref,
             out_ref, attn_ref) = refs
            mask_ref = None

        # Project the query tile; fold 1/sqrt(dim_q) into q (small tensor).
        q = jnp.dot(q_in_ref[...].astype(jnp.bfloat16), wq_ref[...],
                    preferred_element_type=jnp.float32) + bq_ref[...]
        q = (q * inv_scale).astype(jnp.bfloat16)

        # scores = q @ K^T  — K already stored transposed, plain MXU matmul.
        scores = jnp.dot(q, kt_ref[...], preferred_element_type=jnp.float32)

        if has_mask:
            # Mask arrives in its native (narrow) dtype; promote in-kernel.
            scores = scores + mask_ref[...].astype(jnp.float32) * neg_big

        # Softmax in f32 (max-subtracted), approx reciprocal on the EUP slot.
        m = jnp.max(scores, axis=-1, keepdims=True)
        e = jnp.exp(scores - m)
        denom = jnp.sum(e, axis=-1, keepdims=True)
        p = e * pl.reciprocal(denom, approx=True)

        out_ref[...] = jnp.dot(p.astype(jnp.bfloat16), v_ref[...],
                               preferred_element_type=jnp.float32
                               ).astype(out_ref.dtype)
        attn_ref[...] = p.astype(attn_ref.dtype)

    return kernel


# ---------------------------------------------------------------------------
# Public wrapper
# ---------------------------------------------------------------------------
@jax.jit
def attention_head(query, key, value, wq, bq, wk, bk, wv, bv, mask=None):
    B, Sq, dim_in = query.shape
    Sk = key.shape[1]
    dim_q = wq.shape[1]
    dim_k = wk.shape[1]
    if dim_q != dim_k:
        raise ValueError(
            f"AttentionHead requires dim_q == dim_k for q @ k^T; got "
            f"dim_q={dim_q}, dim_k={dim_k}")

    vmem_limit = _vmem_limit_bytes()

    # Grid-invariant params: weights pre-cast to bf16 once, biases as f32 rows.
    wq_b = wq.astype(jnp.bfloat16)
    wk_b = wk.astype(jnp.bfloat16)
    wv_b = wv.astype(jnp.bfloat16)
    bq2 = bq.reshape(1, dim_q).astype(jnp.float32)
    bk2 = bk.reshape(1, dim_k).astype(jnp.float32)
    bv2 = bv.reshape(1, dim_k).astype(jnp.float32)

    # --- stage 1: project K and V once, emit bf16 K^T and V -----------------
    ts = _pick_kv_tile(Sk, dim_in, dim_k, vmem_limit)
    kt, v_proj = _project_kv(key, value, wk_b, bk2, wv_b, bv2, ts, vmem_limit)

    # --- stage 2: fused Q projection + attention over Sq tiles ---------------
    has_mask = mask is not None
    mask_itemsize = mask.dtype.itemsize if has_mask else 0
    tq = _pick_q_tile(Sq, Sk, dim_in, dim_k, mask_itemsize, vmem_limit)
    sq_pad = _round_up(Sq, tq)
    if sq_pad != Sq:
        query = jnp.pad(query, ((0, 0), (0, sq_pad - Sq), (0, 0)))
        if has_mask:
            mask = jnp.pad(mask, ((0, 0), (0, sq_pad - Sq), (0, 0)))
    n_qt = sq_pad // tq

    kernel = _build_attn_kernel(dim_q, has_mask)

    per_b_q = lambda b, qt: (b, qt, 0)     # query / mask / outputs: tiled over Sq
    per_b_kv = lambda b, qt: (b, 0, 0)     # K^T / V: whole sequence per batch
    whole = lambda b, qt: (0, 0)           # weights / biases: grid-invariant

    in_specs = [
        pl.BlockSpec((pl.Squeezed(), tq, dim_in), per_b_q),    # query tile (f32)
        pl.BlockSpec((pl.Squeezed(), dim_k, Sk), per_b_kv),    # K^T (bf16)
        pl.BlockSpec((pl.Squeezed(), Sk, dim_k), per_b_kv),    # V   (bf16)
    ]
    inputs = [query, kt, v_proj]
    if has_mask:
        in_specs.append(pl.BlockSpec((pl.Squeezed(), tq, Sk), per_b_q))
        inputs.append(mask)                                    # native dtype
    in_specs += [
        pl.BlockSpec((dim_in, dim_q), whole),                  # Wq (bf16)
        pl.BlockSpec((1, dim_q), whole),                       # bq (f32)
    ]
    inputs += [wq_b, bq2]

    grid_spec = pltpu.PrefetchScalarGridSpec(
        num_scalar_prefetch=0,
        grid=(B, n_qt),
        in_specs=in_specs,
        out_specs=[
            pl.BlockSpec((pl.Squeezed(), tq, dim_k), per_b_q),  # output
            pl.BlockSpec((pl.Squeezed(), tq, Sk), per_b_q),     # attn
        ],
    )

    # TODO(synk): `attn` is kept f32 (B, Sq, Sk) to match the module's return;
    # a bf16 / skip-attn variant would halve/remove the dominant HBM writeback.
    # TODO(synk): dim_k < 128 leaves lane-padded stores for `out`/V; packing
    # several heads per kernel would need an API change.
    out, attn = pl.pallas_call(
        kernel,
        out_shape=(
            jax.ShapeDtypeStruct((B, sq_pad, dim_k), jnp.float32),
            jax.ShapeDtypeStruct((B, sq_pad, Sk), jnp.float32),
        ),
        grid_spec=grid_spec,
        compiler_params=pltpu.CompilerParams(
            # No cross-tile state anymore: both axes independent -> both TCs
            # usable on v7x even with B == 1.
            dimension_semantics=("parallel", "parallel"),
            vmem_limit_bytes=vmem_limit),
    )(*inputs)

    if sq_pad != Sq:
        out = out[:, :Sq]
        attn = attn[:, :Sq]
    return out, attn


# ---------------------------------------------------------------------------
# Pure-JAX reference (mirrors the PyTorch module)
# ---------------------------------------------------------------------------
def _reference(query, key, value, wq, bq, wk, bk, wv, bv, mask=None):
    q = query @ wq + bq
    k = key @ wk + bk
    v = value @ wv + bv
    temp = jnp.einsum("bqd,bkd->bqk", q, k)
    if mask is not None:
        temp = temp + mask * (-1000000000.0)
    scale = q.shape[-1] ** 0.5
    p = jax.nn.softmax(temp / scale, axis=-1)
    return jnp.einsum("bqk,bkd->bqd", p, v), p


if __name__ == "__main__":
    # Small shapes consistent with the module.
    B, Sq, Sk = 2, 8, 8
    dim_in, dim_q, dim_k = 32, 16, 16   # bmm(q, k^T) requires dim_q == dim_k

    key0 = jax.random.PRNGKey(0)
    ks = jax.random.split(key0, 10)

    # Deterministic parameter init (mimics nn.Linear uniform(-1/sqrt(fan_in), ...)).
    lim = 1.0 / (dim_in ** 0.5)
    wq = jax.random.uniform(ks[0], (dim_in, dim_q), jnp.float32, -lim, lim)
    bq = jax.random.uniform(ks[1], (dim_q,), jnp.float32, -lim, lim)
    wk = jax.random.uniform(ks[2], (dim_in, dim_k), jnp.float32, -lim, lim)
    bk = jax.random.uniform(ks[3], (dim_k,), jnp.float32, -lim, lim)
    wv = jax.random.uniform(ks[4], (dim_in, dim_k), jnp.float32, -lim, lim)
    bv = jax.random.uniform(ks[5], (dim_k,), jnp.float32, -lim, lim)

    query = jax.random.normal(ks[6], (B, Sq, dim_in), jnp.float32)
    key_t = jax.random.normal(ks[7], (B, Sk, dim_in), jnp.float32)
    value = jax.random.normal(ks[8], (B, Sk, dim_in), jnp.float32)
    # 0/1 additive padding mask, kept in a narrow dtype (no f32 HBM stream).
    mask = (jax.random.uniform(ks[9], (B, Sq, Sk)) > 0.8).astype(jnp.bfloat16)

    # Masked path.
    out, attn = attention_head(query, key_t, value, wq, bq, wk, bk, wv, bv, mask)
    jax.block_until_ready((out, attn))
    ref_out, ref_attn = _reference(query, key_t, value, wq, bq, wk, bk, wv, bv,
                                   mask.astype(jnp.float32))
    # bf16 MXU operands + approx reciprocal -> slightly relaxed tolerances.
    assert jnp.allclose(out, ref_out, atol=3e-2, rtol=3e-2), "output mismatch (mask)"
    assert jnp.allclose(attn, ref_attn, atol=3e-2, rtol=3e-2), "attn mismatch (mask)"

    # No-mask path (separate kernel variant, no synthetic zero-mask DMA).
    out2, attn2 = attention_head(query, key_t, value, wq, bq, wk, bk, wv, bv)
    jax.block_until_ready((out2, attn2))
    ref_out2, ref_attn2 = _reference(query, key_t, value, wq, bq, wk, bk, wv, bv)
    assert jnp.allclose(out2, ref_out2, atol=3e-2, rtol=3e-2), "output mismatch (no mask)"
    assert jnp.allclose(attn2, ref_attn2, atol=3e-2, rtol=3e-2), "attn mismatch (no mask)"

    print("KERNEL_OK")
</pallas_src>

<mosaic_0001>
module attributes {stable_mosaic.version = 11 : i64} {
  func.func @_kv_project_kernel(%arg0: i32, %arg1: i32, %arg2: memref<1x8x32xf32, #tpu.memory_space<vmem>>, %arg3: memref<1x8x32xf32, #tpu.memory_space<vmem>>, %arg4: memref<32x16xbf16, #tpu.memory_space<vmem>>, %arg5: memref<1x16xf32, #tpu.memory_space<vmem>>, %arg6: memref<32x16xbf16, #tpu.memory_space<vmem>>, %arg7: memref<1x16xf32, #tpu.memory_space<vmem>>, %arg8: memref<1x16x8xbf16, #tpu.memory_space<vmem>>, %arg9: memref<1x8x16xbf16, #tpu.memory_space<vmem>>) attributes {dimension_semantics = [#tpu.dimension_semantics<parallel>, #tpu.dimension_semantics<parallel>], iteration_bounds = array<i64: 2, 1>, scalar_prefetch = 0 : i64, scratch_operands = 0 : i64, tpu.core_type = #tpu.core_type<tc>, window_params = [{transform_indices = @transform_0, window_bounds = array<i64: 1, 8, 32>}, {transform_indices = @transform_1, window_bounds = array<i64: 1, 8, 32>}, {pipeline_mode = #tpu.pipeline_mode<synchronous>, transform_indices = @transform_2, window_bounds = array<i64: 32, 16>}, {pipeline_mode = #tpu.pipeline_mode<synchronous>, transform_indices = @transform_3, window_bounds = array<i64: 1, 16>}, {pipeline_mode = #tpu.pipeline_mode<synchronous>, transform_indices = @transform_4, window_bounds = array<i64: 32, 16>}, {pipeline_mode = #tpu.pipeline_mode<synchronous>, transform_indices = @transform_5, window_bounds = array<i64: 1, 16>}, {transform_indices = @transform_6, window_bounds = array<i64: 1, 16, 8>}, {transform_indices = @transform_7, window_bounds = array<i64: 1, 8, 16>}]} {
    %c0 = arith.constant 0 : index
    %c0_0 = arith.constant 0 : index
    %c0_1 = arith.constant 0 : index
    %0 = vector.load %arg2[%c0, %c0_0, %c0_1] : memref<1x8x32xf32, #tpu.memory_space<vmem>>, vector<1x8x32xf32>
    %1 = vector.shape_cast %0 : vector<1x8x32xf32> to vector<8x32xf32>
    %2 = arith.truncf %1 : vector<8x32xf32> to vector<8x32xbf16>
    %c0_2 = arith.constant 0 : index
    %c0_3 = arith.constant 0 : index
    %3 = vector.load %arg4[%c0_2, %c0_3] : memref<32x16xbf16, #tpu.memory_space<vmem>>, vector<32x16xbf16>
    %cst = arith.constant dense<0.000000e+00> : vector<8x16xf32>
    %4 = tpu.matmul %2, %3, %cst {dimension_numbers = #tpu.dot_dimension_numbers<[1], [0], [0], [1], [0, 0, 1, 1], [], []>} : vector<8x32xbf16>, vector<32x16xbf16>, vector<8x16xf32> -> vector<8x16xf32>
    %c0_4 = arith.constant 0 : index
    %c0_5 = arith.constant 0 : index
    %5 = vector.load %arg5[%c0_4, %c0_5] : memref<1x16xf32, #tpu.memory_space<vmem>>, vector<1x16xf32>
    %6 = vector.broadcast %5 : vector<1x16xf32> to vector<8x16xf32>
    %7 = arith.addf %4, %6 : vector<8x16xf32>
    %c0_6 = arith.constant 0 : index
    %c0_7 = arith.constant 0 : index
    %c0_8 = arith.constant 0 : index
    %8 = vector.load %arg3[%c0_6, %c0_7, %c0_8] : memref<1x8x32xf32, #tpu.memory_space<vmem>>, vector<1x8x32xf32>
    %9 = vector.shape_cast %8 : vector<1x8x32xf32> to vector<8x32xf32>
    %10 = arith.truncf %9 : vector<8x32xf32> to vector<8x32xbf16>
    %c0_9 = arith.constant 0 : index
    %c0_10 = arith.constant 0 : index
    %11 = vector.load %arg6[%c0_9, %c0_10] : memref<32x16xbf16, #tpu.memory_space<vmem>>, vector<32x16xbf16>
    %cst_11 = arith.constant dense<0.000000e+00> : vector<8x16xf32>
    %12 = tpu.matmul %10, %11, %cst_11 {dimension_numbers = #tpu.dot_dimension_numbers<[1], [0], [0], [1], [0, 0, 1, 1], [], []>} : vector<8x32xbf16>, vector<32x16xbf16>, vector<8x16xf32> -> vector<8x16xf32>
    %c0_12 = arith.constant 0 : index
    %c0_13 = arith.constant 0 : index
    %13 = vector.load %arg7[%c0_12, %c0_13] : memref<1x16xf32, #tpu.memory_space<vmem>>, vector<1x16xf32>
    %14 = vector.broadcast %13 : vector<1x16xf32> to vector<8x16xf32>
    %15 = arith.addf %12, %14 : vector<8x16xf32>
    %16 = tpu.transpose %7, [1, 0] : vector<8x16xf32> -> vector<16x8xf32>
    %17 = arith.truncf %16 : vector<16x8xf32> to vector<16x8xbf16>
    %c0_14 = arith.constant 0 : index
    %c0_15 = arith.constant 0 : index
    %c0_16 = arith.constant 0 : index
    %18 = vector.load %arg8[%c0_14, %c0_15, %c0_16] : memref<1x16x8xbf16, #tpu.memory_space<vmem>>, vector<1x16x8xbf16>
    %19 = vector.shape_cast %18 : vector<1x16x8xbf16> to vector<16x8xbf16>
    %20 = vector.shape_cast %17 : vector<16x8xbf16> to vector<1x16x8xbf16>
    tpu.vector_store %arg8[%c0_14, %c0_15, %c0_16], %20 {strides = array<i32>} : memref<1x16x8xbf16, #tpu.memory_space<vmem>>, vector<1x16x8xbf16>,
    %21 = arith.truncf %15 : vector<8x16xf32> to vector<8x16xbf16>
    %c0_17 = arith.constant 0 : index
    %c0_18 = arith.constant 0 : index
    %c0_19 = arith.constant 0 : index
    %22 = vector.load %arg9[%c0_17, %c0_18, %c0_19] : memref<1x8x16xbf16, #tpu.memory_space<vmem>>, vector<1x8x16xbf16>
    %23 = vector.shape_cast %22 : vector<1x8x16xbf16> to vector<8x16xbf16>
    %24 = vector.shape_cast %21 : vector<8x16xbf16> to vector<1x8x16xbf16>
    tpu.vector_store %arg9[%c0_17, %c0_18, %c0_19], %24 {strides = array<i32>} : memref<1x8x16xbf16, #tpu.memory_space<vmem>>, vector<1x8x16xbf16>,
    return
  }
  func.func @transform_0(%arg0: i32, %arg1: i32) -> (i32, i32, i32) {
    %c0_i32 = arith.constant 0 : i32
    %c0_i32_0 = arith.constant 0 : i32
    return %arg0, %arg1, %c0_i32 : i32, i32, i32
  }
  func.func @transform_1(%arg0: i32, %arg1: i32) -> (i32, i32, i32) {
    %c0_i32 = arith.constant 0 : i32
    %c0_i32_0 = arith.constant 0 : i32
    return %arg0, %arg1, %c0_i32 : i32, i32, i32
  }
  func.func @transform_2(%arg0: i32, %arg1: i32) -> (i32, i32) {
    %c0_i32 = arith.constant 0 : i32
    %c0_i32_0 = arith.constant 0 : i32
    %c0_i32_1 = arith.constant 0 : i32
    return %c0_i32, %c0_i32_0 : i32, i32
  }
  func.func @transform_3(%arg0: i32, %arg1: i32) -> (i32, i32) {
    %c0_i32 = arith.constant 0 : i32
    %c0_i32_0 = arith.constant 0 : i32
    %c0_i32_1 = arith.constant 0 : i32
    return %c0_i32, %c0_i32_0 : i32, i32
  }
  func.func @transform_4(%arg0: i32, %arg1: i32) -> (i32, i32) {
    %c0_i32 = arith.constant 0 : i32
    %c0_i32_0 = arith.constant 0 : i32
    %c0_i32_1 = arith.constant 0 : i32
    return %c0_i32, %c0_i32_0 : i32, i32
  }
  func.func @transform_5(%arg0: i32, %arg1: i32) -> (i32, i32) {
    %c0_i32 = arith.constant 0 : i32
    %c0_i32_0 = arith.constant 0 : i32
    %c0_i32_1 = arith.constant 0 : i32
    return %c0_i32, %c0_i32_0 : i32, i32
  }
  func.func @transform_6(%arg0: i32, %arg1: i32) -> (i32, i32, i32) {
    %c0_i32 = arith.constant 0 : i32
    %c0_i32_0 = arith.constant 0 : i32
    return %arg0, %c0_i32, %arg1 : i32, i32, i32
  }
  func.func @transform_7(%arg0: i32, %arg1: i32) -> (i32, i32, i32) {
    %c0_i32 = arith.constant 0 : i32
    %c0_i32_0 = arith.constant 0 : i32
    return %arg0, %arg1, %c0_i32 : i32, i32, i32
  }
}

module attributes {stable_mosaic.version = 11 : i64} {
  func.func @kernel(%arg0: i32, %arg1: i32, %arg2: memref<1x8x32xf32, #tpu.memory_space<vmem>>, %arg3: memref<1x16x8xbf16, #tpu.memory_space<vmem>>, %arg4: memref<1x8x16xbf16, #tpu.memory_space<vmem>>, %arg5: memref<1x8x8xbf16, #tpu.memory_space<vmem>>, %arg6: memref<32x16xbf16, #tpu.memory_space<vmem>>, %arg7: memref<1x16xf32, #tpu.memory_space<vmem>>, %arg8: memref<1x8x16xf32, #tpu.memory_space<vmem>>, %arg9: memref<1x8x8xf32, #tpu.memory_space<vmem>>) attributes {dimension_semantics = [#tpu.dimension_semantics<parallel>, #tpu.dimension_semantics<parallel>], iteration_bounds = array<i64: 2, 1>, scalar_prefetch = 0 : i64, scratch_operands = 0 : i64, tpu.core_type = #tpu.core_type<tc>, window_params = [{transform_indices = @transform_0, window_bounds = array<i64: 1, 8, 32>}, {transform_indices = @transform_1, window_bounds = array<i64: 1, 16, 8>}, {transform_indices = @transform_2, window_bounds = array<i64: 1, 8, 16>}, {transform_indices = @transform_3, window_bounds = array<i64: 1, 8, 8>}, {pipeline_mode = #tpu.pipeline_mode<synchronous>, transform_indices = @transform_4, window_bounds = array<i64: 32, 16>}, {pipeline_mode = #tpu.pipeline_mode<synchronous>, transform_indices = @transform_5, window_bounds = array<i64: 1, 16>}, {transform_indices = @transform_6, window_bounds = array<i64: 1, 8, 16>}, {transform_indices = @transform_7, window_bounds = array<i64: 1, 8, 8>}]} {
    %c0 = arith.constant 0 : index
    %c0_0 = arith.constant 0 : index
    %c0_1 = arith.constant 0 : index
    %0 = vector.load %arg2[%c0, %c0_0, %c0_1] : memref<1x8x32xf32, #tpu.memory_space<vmem>>, vector<1x8x32xf32>
    %1 = vector.shape_cast %0 : vector<1x8x32xf32> to vector<8x32xf32>
    %2 = arith.truncf %1 : vector<8x32xf32> to vector<8x32xbf16>
    %c0_2 = arith.constant 0 : index
    %c0_3 = arith.constant 0 : index
    %3 = vector.load %arg6[%c0_2, %c0_3] : memref<32x16xbf16, #tpu.memory_space<vmem>>, vector<32x16xbf16>
    %cst = arith.constant dense<0.000000e+00> : vector<8x16xf32>
    %4 = tpu.matmul %2, %3, %cst {dimension_numbers = #tpu.dot_dimension_numbers<[1], [0], [0], [1], [0, 0, 1, 1], [], []>} : vector<8x32xbf16>, vector<32x16xbf16>, vector<8x16xf32> -> vector<8x16xf32>
    %c0_4 = arith.constant 0 : index
    %c0_5 = arith.constant 0 : index
    %5 = vector.load %arg7[%c0_4, %c0_5] : memref<1x16xf32, #tpu.memory_space<vmem>>, vector<1x16xf32>
    %6 = vector.broadcast %5 : vector<1x16xf32> to vector<8x16xf32>
    %7 = arith.addf %4, %6 : vector<8x16xf32>
    %cst_6 = arith.constant 2.500000e-01 : f32
    %8 = vector.broadcast %cst_6 : f32 to vector<8x16xf32>
    %9 = arith.mulf %7, %8 : vector<8x16xf32>
    %10 = arith.truncf %9 : vector<8x16xf32> to vector<8x16xbf16>
    %c0_7 = arith.constant 0 : index
    %c0_8 = arith.constant 0 : index
    %c0_9 = arith.constant 0 : index
    %11 = vector.load %arg3[%c0_7, %c0_8, %c0_9] : memref<1x16x8xbf16, #tpu.memory_space<vmem>>, vector<1x16x8xbf16>
    %12 = vector.shape_cast %11 : vector<1x16x8xbf16> to vector<16x8xbf16>
    %cst_10 = arith.constant dense<0.000000e+00> : vector<8x8xf32>
    %13 = tpu.matmul %10, %12, %cst_10 {dimension_numbers = #tpu.dot_dimension_numbers<[1], [0], [0], [1], [0, 0, 1, 1], [], []>} : vector<8x16xbf16>, vector<16x8xbf16>, vector<8x8xf32> -> vector<8x8xf32>
    %c0_11 = arith.constant 0 : index
    %c0_12 = arith.constant 0 : index
    %c0_13 = arith.constant 0 : index
    %14 = vector.load %arg5[%c0_11, %c0_12, %c0_13] : memref<1x8x8xbf16, #tpu.memory_space<vmem>>, vector<1x8x8xbf16>
    %15 = vector.shape_cast %14 : vector<1x8x8xbf16> to vector<8x8xbf16>
    %16 = arith.extf %15 : vector<8x8xbf16> to vector<8x8xf32>
    %cst_14 = arith.constant -2.500000e+08 : f32
    %17 = vector.broadcast %cst_14 : f32 to vector<8x8xf32>
    %18 = arith.mulf %16, %17 : vector<8x8xf32>
    %19 = arith.addf %13, %18 : vector<8x8xf32>
    %cst_15 = arith.constant dense<0xFF800000> : vector<8xf32>
    %20 = vector.multi_reduction <maximumf>, %19, %cst_15 [1] : vector<8x8xf32> to vector<8xf32>
    %21 = vector.shape_cast %20 : vector<8xf32> to vector<8x1xf32>
    %22 = vector.broadcast %21 : vector<8x1xf32> to vector<8x8xf32>
    %23 = arith.subf %19, %22 : vector<8x8xf32>
    %24 = math.exp %23 : vector<8x8xf32>
    %cst_16 = arith.constant dense<0.000000e+00> : vector<8xf32>
    %25 = vector.multi_reduction <add>, %24, %cst_16 [1] : vector<8x8xf32> to vector<8xf32>
    %26 = vector.shape_cast %25 : vector<8xf32> to vector<8x1xf32>
    %27 = tpu.reciprocal %26 {approx = true} : vector<8x1xf32> -> vector<8x1xf32>
    %28 = vector.broadcast %27 : vector<8x1xf32> to vector<8x8xf32>
    %29 = arith.mulf %24, %28 : vector<8x8xf32>
    %30 = arith.truncf %29 : vector<8x8xf32> to vector<8x8xbf16>
    %c0_17 = arith.constant 0 : index
    %c0_18 = arith.constant 0 : index
    %c0_19 = arith.constant 0 : index
    %31 = vector.load %arg4[%c0_17, %c0_18, %c0_19] : memref<1x8x16xbf16, #tpu.memory_space<vmem>>, vector<1x8x16xbf16>
    %32 = vector.shape_cast %31 : vector<1x8x16xbf16> to vector<8x16xbf16>
    %cst_20 = arith.constant dense<0.000000e+00> : vector<8x16xf32>
    %33 = tpu.matmul %30, %32, %cst_20 {dimension_numbers = #tpu.dot_dimension_numbers<[1], [0], [0], [1], [0, 0, 1, 1], [], []>} : vector<8x8xbf16>, vector<8x16xbf16>, vector<8x16xf32> -> vector<8x16xf32>
    %c0_21 = arith.constant 0 : index
    %c0_22 = arith.constant 0 : index
    %c0_23 = arith.constant 0 : index
    %34 = vector.load %arg8[%c0_21, %c0_22, %c0_23] : memref<1x8x16xf32, #tpu.memory_space<vmem>>, vector<1x8x16xf32>
    %35 = vector.shape_cast %34 : vector<1x8x16xf32> to vector<8x16xf32>
    %36 = vector.shape_cast %33 : vector<8x16xf32> to vector<1x8x16xf32>
    tpu.vector_store %arg8[%c0_21, %c0_22, %c0_23], %36 {strides = array<i32>} : memref<1x8x16xf32, #tpu.memory_space<vmem>>, vector<1x8x16xf32>,
    %c0_24 = arith.constant 0 : index
    %c0_25 = arith.constant 0 : index
    %c0_26 = arith.constant 0 : index
    %37 = vector.load %arg9[%c0_24, %c0_25, %c0_26] : memref<1x8x8xf32, #tpu.memory_space<vmem>>, vector<1x8x8xf32>
    %38 = vector.shape_cast %37 : vector<1x8x8xf32> to vector<8x8xf32>
    %39 = vector.shape_cast %29 : vector<8x8xf32> to vector<1x8x8xf32>
    tpu.vector_store %arg9[%c0_24, %c0_25, %c0_26], %39 {strides = array<i32>} : memref<1x8x8xf32, #tpu.memory_space<vmem>>, vector<1x8x8xf32>,
    return
  }
  func.func @transform_0(%arg0: i32, %arg1: i32) -> (i32, i32, i32) {
    %c0_i32 = arith.constant 0 : i32
    %c0_i32_0 = arith.constant 0 : i32
    return %arg0, %arg1, %c0_i32 : i32, i32, i32
  }
  func.func @transform_1(%arg0: i32, %arg1: i32) -> (i32, i32, i32) {
    %c0_i32 = arith.constant 0 : i32
    %c0_i32_0 = arith.constant 0 : i32
    %c0_i32_1 = arith.constant 0 : i32
    return %arg0, %c0_i32, %c0_i32_0 : i32, i32, i32
  }
  func.func @transform_2(%arg0: i32, %arg1: i32) -> (i32, i32, i32) {
    %c0_i32 = arith.constant 0 : i32
    %c0_i32_0 = arith.constant 0 : i32
    %c0_i32_1 = arith.constant 0 : i32
    return %arg0, %c0_i32, %c0_i32_0 : i32, i32, i32
  }
  func.func @transform_3(%arg0: i32, %arg1: i32) -> (i32, i32, i32) {
    %c0_i32 = arith.constant 0 : i32
    %c0_i32_0 = arith.constant 0 : i32
    return %arg0, %arg1, %c0_i32 : i32, i32, i32
  }
  func.func @transform_4(%arg0: i32, %arg1: i32) -> (i32, i32) {
    %c0_i32 = arith.constant 0 : i32
    %c0_i32_0 = arith.constant 0 : i32
    %c0_i32_1 = arith.constant 0 : i32
    return %c0_i32, %c0_i32_0 : i32, i32
  }
  func.func @transform_5(%arg0: i32, %arg1: i32) -> (i32, i32) {
    %c0_i32 = arith.constant 0 : i32
    %c0_i32_0 = arith.constant 0 : i32
    %c0_i32_1 = arith.constant 0 : i32
    return %c0_i32, %c0_i32_0 : i32, i32
  }
  func.func @transform_6(%arg0: i32, %arg1: i32) -> (i32, i32, i32) {
    %c0_i32 = arith.constant 0 : i32
    %c0_i32_0 = arith.constant 0 : i32
    return %arg0, %arg1, %c0_i32 : i32, i32, i32
  }
  func.func @transform_7(%arg0: i32, %arg1: i32) -> (i32, i32, i32) {
    %c0_i32 = arith.constant 0 : i32
    %c0_i32_0 = arith.constant 0 : i32
    return %arg0, %arg1, %c0_i32 : i32, i32, i32
  }
}

</mosaic_0001>

<llo_original>
// kernel: attention_head.3
$region0: #{attention_head.3}
  #allocation0 [shape = 'u32[]', space=smem, size = 0x4, offset = 0x4, fixed_abs, tag = 'smem constant byte address 0x4 - core index']
  #allocation1 [shape = 'u32[144,128]{1,0:T(1,128)}', space=vmem, size = 0x12000, scoped, tag = 'internal scratch']
  %s0 = inlined_call_operand.hbm [shape: f32[2,8,32], index: 0, kind: input, shape index: {}]
  %s1 = inlined_call_operand.hbm [shape: bf16[2,16,8], index: 1, kind: input, shape index: {}]
  %s2 = inlined_call_operand.hbm [shape: bf16[2,8,16], index: 2, kind: input, shape index: {}]
  %s3 = inlined_call_operand.hbm [shape: bf16[2,8,8], index: 3, kind: input, shape index: {}]
  %s4 = inlined_call_operand.hbm [shape: bf16[32,16], index: 4, kind: input, shape index: {}]
  %s5 = inlined_call_operand.hbm [shape: f32[1,16], index: 5, kind: input, shape index: {}]
  %s6 = inlined_call_operand.hbm [shape: f32[2,8,16], index: 6, kind: output, shape index: {0}]
  %s7 = inlined_call_operand.hbm [shape: f32[2,8,8], index: 7, kind: output, shape index: {1}]
  %8 = xla_tuple %s6, %s7
  %s9 = sld [smem:[#allocation0]]
  $region89: #{attention_head.3} parent=0
    _
  %s11 = ssub.s32 1, %s9
  %s12 = scalar_select 0, %s11, %s9
  $region1: #{attention_head.3} parent=0
    #allocation2 [shape = 'u8[8192]{0}', space=vmem, size = 0x2000, scoped, tag = 'input window, operand 0']
    #allocation3 [shape = 's32[2]{0}', space=sflag, size = 0x8, scoped, tag = 'scoped memory for attention_head.3']
    #allocation4 [shape = 's32[2]{0}', space=sflag, size = 0x8, scoped, tag = 'scoped memory for attention_head.3']
    #allocation5 [shape = 'u8[8192]{0}', space=vmem, size = 0x2000, scoped, tag = 'input window, operand 1']
    #allocation6 [shape = 's32[2]{0}', space=sflag, size = 0x8, scoped, tag = 'scoped memory for attention_head.3']
    #allocation7 [shape = 'u8[4096]{0}', space=vmem, size = 0x1000, scoped, tag = 'input window, operand 2']
    #allocation8 [shape = 'u8[4096]{0}', space=vmem, size = 0x1000, scoped, tag = 'input window, operand 3']
    #allocation9 [shape = 's32[2]{0}', space=sflag, size = 0x8, scoped, tag = 'scoped memory for attention_head.3']
    #allocation10 [shape = 'u8[8192]{0}', space=vmem, size = 0x2000, scoped, tag = 'input window, operand 4, single buffered']
    #allocation11 [shape = 'u8[512]{0}', space=vmem, size = 0x400, scoped, tag = 'input window, operand 5, single buffered']
    #allocation12 [shape = 's32[1]{0}', space=sflag, size = 0x4, scoped, tag = 'scoped memory for attention_head.3']
    #allocation13 [shape = 'u8[8192]{0}', space=vmem, size = 0x2000, scoped, tag = 'output window, operand 0']
    #allocation14 [shape = 'u8[8192]{0}', space=vmem, size = 0x2000, scoped, tag = 'output window, operand 1']
    #allocation15 [shape = 's32[2]{0}', space=sflag, size = 0x8, scoped, tag = 'scoped memory for attention_head.3']
    %13 = vsyncpa [#allocation3], 0
    %s14 = scalar_lea.sflag [#allocation3], 1
    %15 = vsyncpa %s14, 0
    %16 = vsyncpa [#allocation6], 0
    %s17 = scalar_lea.sflag [#allocation6], 1
    %18 = vsyncpa %s17, 0
    %19 = vsyncpa [#allocation9], 0
    %s20 = scalar_lea.sflag [#allocation9], 1
    %21 = vsyncpa %s20, 0
    %22 = vsyncpa [#allocation12], 0
    %23 = vsyncpa [#allocation4], 0
    %s24 = scalar_lea.sflag [#allocation4], 1
    %25 = vsyncpa %s24, 0
    %26 = vsyncpa [#allocation15], 0
    %s27 = scalar_lea.sflag [#allocation15], 1
    %28 = vsyncpa %s27, 0
    loop: start=0, step=1, limit=4
    $region2: #{attention_head.3} parent=1 // loop_pre_header
      _
    $region3: #{attention_head.3} parent=1 // loop_header
      %s30 = sphi 0, %s34
      %p31 = scmp.ge.s32.totalorder %s30, 4
      %s37 = sphi 0, %s49
      %s38 = sphi 0, %s45
      %s39 = sphi 0, %s37
      %s40 = sphi 0, %s38
      %s41 = sphi 0, %s39
      %s42 = sphi 0, %s40
      %s54 = sphi 0, %s56
      %s57 = sphi 0, %s54
      %s58 = sphi 0, %s57
      %s74 = sphi 0, %s58
      %s80 = sphi 0, %s82
      %s83 = sphi 0, %s80
      %s84 = sphi 0, %s83
      %s100 = sphi 0, %s84
      %s106 = sphi 0, %s108
      %s109 = sphi 0, %s106
      %s110 = sphi 0, %s109
      %s126 = sphi 0, %s110
      %s134 = sphi 0, %s136
      %s137 = sphi 0, %s134
      %s138 = sphi 0, %s137
      %s154 = sphi 0, %s138
      %s158 = sphi 0, %s158
      %s160 = sphi 0, %s158
      %s161 = sphi 0, %s160
      %s175 = sphi 0, %s161
      %s179 = sphi 0, %s179
      %s181 = sphi 0, %s179
      %s182 = sphi 0, %s181
      %s196 = sphi 0, %s182
      %s204 = sphi 0, %s206
      %s207 = sphi 0, %s204
      %s208 = sphi 0, %s207
      %s224 = sphi 0, %s208
      %s232 = sphi 0, %s234
      %s235 = sphi 0, %s232
      %s236 = sphi 0, %s235
      %s252 = sphi 0, %s236
    $region4: #{attention_head.3} parent=1 // loop_header_branch
      %33 = sbr.rel (%p31) target = $region8
    $region5: #{attention_head.3} parent=1 // loop_body
      %s35 = ssub.s32 %s30, 1
      %s36 = ssub.s32 %s30, 2
      %s43 = sadd.s32 1, %s38
      %p44 = scmp.ge.s32.totalorder %s43, 1
      %s45 = scalar_select %p44, 0, %s43
      %s46 = sadd.s32 1, %s37
      %s47 = scalar_select %p44, %s46, %s37
      %p48 = scmp.ge.s32.totalorder %s47, 2
      %s49 = scalar_select %p48, 0, %s47
      %s50 = ssub.s32 %s37, %s49
      %s51 = ssub.s32 %s38, %s45
      %s52 = sor.u32 %s50, %s51
      %p53 = scmp.eq.s32.totalorder %s52, 0
      %s55 = sadd.s32 %s54, 1
      %s56 = scalar_select %p53, %s54, %s55
      %p59 = pneg %p53
      %p60 = scmp.eq.s32.totalorder %s30, 1
      %p61 = por %p59, %p60
      %p62 = scmp.ne.s32.totalorder %s54, %s57
      %p63 = scmp.eq.s32.totalorder %s30, 0
      %p64 = por %p62, %p63
      %p65 = scmp.ne.s32.totalorder %s54, %s57
      %p66 = scmp.eq.s32.totalorder %s35, 1
      %p67 = por %p65, %p66
      %p68 = scmp.ne.s32.totalorder %s57, %s58
      %p69 = scmp.eq.s32.totalorder %s35, 0
      %p70 = por %p68, %p69
      %p71 = scmp.ne.s32.totalorder %s57, %s58
      %p72 = scmp.eq.s32.totalorder %s36, 1
      %p73 = por %p71, %p72
      %p75 = scmp.ne.s32.totalorder %s58, %s74
      %p76 = scmp.eq.s32.totalorder %s36, 0
      %p77 = por %p75, %p76
      %s78 = ssub.s32 %s37, %s49
      %p79 = scmp.eq.s32.totalorder %s78, 0
      %s81 = sadd.s32 %s80, 1
      %s82 = scalar_select %p79, %s80, %s81
      %p85 = pneg %p79
      %p86 = scmp.eq.s32.totalorder %s30, 1
      %p87 = por %p85, %p86
      %p88 = scmp.ne.s32.totalorder %s80, %s83
      %p89 = scmp.eq.s32.totalorder %s30, 0
      %p90 = por %p88, %p89
      %p91 = scmp.ne.s32.totalorder %s80, %s83
      %p92 = scmp.eq.s32.totalorder %s35, 1
      %p93 = por %p91, %p92
      %p94 = scmp.ne.s32.totalorder %s83, %s84
      %p95 = scmp.eq.s32.totalorder %s35, 0
      %p96 = por %p94, %p95
      %p97 = scmp.ne.s32.totalorder %s83, %s84
      %p98 = scmp.eq.s32.totalorder %s36, 1
      %p99 = por %p97, %p98
      %p101 = scmp.ne.s32.totalorder %s84, %s100
      %p102 = scmp.eq.s32.totalorder %s36, 0
      %p103 = por %p101, %p102
      %s104 = ssub.s32 %s37, %s49
      %p105 = scmp.eq.s32.totalorder %s104, 0
      %s107 = sadd.s32 %s106, 1
      %s108 = scalar_select %p105, %s106, %s107
      %p111 = pneg %p105
      %p112 = scmp.eq.s32.totalorder %s30, 1
      %p113 = por %p111, %p112
      %p114 = scmp.ne.s32.totalorder %s106, %s109
      %p115 = scmp.eq.s32.totalorder %s30, 0
      %p116 = por %p114, %p115
      %p117 = scmp.ne.s32.totalorder %s106, %s109
      %p118 = scmp.eq.s32.totalorder %s35, 1
      %p119 = por %p117, %p118
      %p120 = scmp.ne.s32.totalorder %s109, %s110
      %p121 = scmp.eq.s32.totalorder %s35, 0
      %p122 = por %p120, %p121
      %p123 = scmp.ne.s32.totalorder %s109, %s110
      %p124 = scmp.eq.s32.totalorder %s36, 1
      %p125 = por %p123, %p124
      %p127 = scmp.ne.s32.totalorder %s110, %s126
      %p128 = scmp.eq.s32.totalorder %s36, 0
      %p129 = por %p127, %p128
      %s130 = ssub.s32 %s37, %s49
      %s131 = ssub.s32 %s38, %s45
      %s132 = sor.u32 %s130, %s131
      %p133 = scmp.eq.s32.totalorder %s132, 0
      %s135 = sadd.s32 %s134, 1
      %s136 = scalar_select %p133, %s134, %s135
      %p139 = pneg %p133
      %p140 = scmp.eq.s32.totalorder %s30, 1
      %p141 = por %p139, %p140
      %p142 = scmp.ne.s32.totalorder %s134, %s137
      %p143 = scmp.eq.s32.totalorder %s30, 0
      %p144 = por %p142, %p143
      %p145 = scmp.ne.s32.totalorder %s134, %s137
      %p146 = scmp.eq.s32.totalorder %s35, 1
      %p147 = por %p145, %p146
      %p148 = scmp.ne.s32.totalorder %s137, %s138
      %p149 = scmp.eq.s32.totalorder %s35, 0
      %p150 = por %p148, %p149
      %p151 = scmp.ne.s32.totalorder %s137, %s138
      %p152 = scmp.eq.s32.totalorder %s36, 1
      %p153 = por %p151, %p152
      %p155 = scmp.ne.s32.totalorder %s138, %s154
      %p156 = scmp.eq.s32.totalorder %s36, 0
      %p157 = por %p155, %p156
      %s159 = sadd.s32 %s158, 1
      %p162 = scmp.eq.s32.totalorder %s30, 1
      %p163 = scmp.ne.s32.totalorder %s158, %s160
      %p164 = scmp.eq.s32.totalorder %s30, 0
      %p165 = por %p163, %p164
      %p166 = scmp.ne.s32.totalorder %s158, %s160
      %p167 = scmp.eq.s32.totalorder %s35, 1
      %p168 = por %p166, %p167
      %p169 = scmp.ne.s32.totalorder %s160, %s161
      %p170 = scmp.eq.s32.totalorder %s35, 0
      %p171 = por %p169, %p170
      %p172 = scmp.ne.s32.totalorder %s160, %s161
      %p173 = scmp.eq.s32.totalorder %s36, 1
      %p174 = por %p172, %p173
      %p176 = scmp.ne.s32.totalorder %s161, %s175
      %p177 = scmp.eq.s32.totalorder %s36, 0
      %p178 = por %p176, %p177
      %s180 = sadd.s32 %s179, 1
      %p183 = scmp.eq.s32.totalorder %s30, 1
      %p184 = scmp.ne.s32.totalorder %s179, %s181
      %p185 = scmp.eq.s32.totalorder %s30, 0
      %p186 = por %p184, %p185
      %p187 = scmp.ne.s32.totalorder %s179, %s181
      %p188 = scmp.eq.s32.totalorder %s35, 1
      %p189 = por %p187, %p188
      %p190 = scmp.ne.s32.totalorder %s181, %s182
      %p191 = scmp.eq.s32.totalorder %s35, 0
      %p192 = por %p190, %p191
      %p193 = scmp.ne.s32.totalorder %s181, %s182
      %p194 = scmp.eq.s32.totalorder %s36, 1
      %p195 = por %p193, %p194
      %p197 = scmp.ne.s32.totalorder %s182, %s196
      %p198 = scmp.eq.s32.totalorder %s36, 0
      %p199 = por %p197, %p198
      %s200 = ssub.s32 %s37, %s49
      %s201 = ssub.s32 %s38, %s45
      %s202 = sor.u32 %s200, %s201
      %p203 = scmp.eq.s32.totalorder %s202, 0
      %s205 = sadd.s32 %s204, 1
      %s206 = scalar_select %p203, %s204, %s205
      %p209 = pneg %p203
      %p210 = scmp.eq.s32.totalorder %s30, 1
      %p211 = por %p209, %p210
      %p212 = scmp.ne.s32.totalorder %s204, %s207
      %p213 = scmp.eq.s32.totalorder %s30, 0
      %p214 = por %p212, %p213
      %p215 = scmp.ne.s32.totalorder %s204, %s207
      %p216 = scmp.eq.s32.totalorder %s35, 1
      %p217 = por %p215, %p216
      %p218 = scmp.ne.s32.totalorder %s207, %s208
      %p219 = scmp.eq.s32.totalorder %s35, 0
      %p220 = por %p218, %p219
      %p221 = scmp.ne.s32.totalorder %s207, %s208
      %p222 = scmp.eq.s32.totalorder %s36, 1
      %p223 = por %p221, %p222
      %p225 = scmp.ne.s32.totalorder %s208, %s224
      %p226 = scmp.eq.s32.totalorder %s36, 0
      %p227 = por %p225, %p226
      %s228 = ssub.s32 %s37, %s49
      %s229 = ssub.s32 %s38, %s45
      %s230 = sor.u32 %s228, %s229
      %p231 = scmp.eq.s32.totalorder %s230, 0
      %s233 = sadd.s32 %s232, 1
      %s234 = scalar_select %p231, %s232, %s233
      %p237 = pneg %p231
      %p238 = scmp.eq.s32.totalorder %s30, 1
      %p239 = por %p237, %p238
      %p240 = scmp.ne.s32.totalorder %s232, %s235
      %p241 = scmp.eq.s32.totalorder %s30, 0
      %p242 = por %p240, %p241
      %p243 = scmp.ne.s32.totalorder %s232, %s235
      %p244 = scmp.eq.s32.totalorder %s35, 1
      %p245 = por %p243, %p244
      %p246 = scmp.ne.s32.totalorder %s235, %s236
      %p247 = scmp.eq.s32.totalorder %s35, 0
      %p248 = por %p246, %p247
      %p249 = scmp.ne.s32.totalorder %s235, %s236
      %p250 = scmp.eq.s32.totalorder %s36, 1
      %p251 = por %p249, %p250
      %p253 = scmp.ne.s32.totalorder %s236, %s252
      %p254 = scmp.eq.s32.totalorder %s36, 0
      %p255 = por %p253, %p254
      %p256 = scmp.le.s32.totalorder 1, %s30
      %p257 = scmp.lt.s32.totalorder %s30, 3
      %p258 = pnand %p256, %p257
      %p259 = pneg %p258
      // Predicated region
      $region9: #{attention_head.3} parent=5 // pred_check
        _
      $region10: #{attention_head.3} parent=5 // pred_check_branch
        %261 = sbr.rel (%p258) target = $region12
      $region11: #{attention_head.3} parent=5 // pred_region
        %s262 = ssub.s32 %s30, 1
        // Predicated region
        $region13: #{attention_head.3} parent=11 // pred_check
          %p263 = pneg %p171
        $region14: #{attention_head.3} parent=11 // pred_check_branch
          %265 = sbr.rel (%p263) target = $region16
        $region15: #{attention_head.3} parent=11 // pred_region
          %s267 = ssub.s32 256, 256
          %268 = vsyncadd [#allocation9], %s267
          %s269 = sshll.u32 [#allocation10], 4
          %s270 = int_to_ptr.vmem [resolvable:$true] %s269
          %275 = dma.hbm_to_vmem [thread:$0]  %s4, 256, %s270, [#allocation9], 64, 64, 4
        $region16: #{attention_head.3} parent=11 // pred_fallthru
          _
        // Predicated region
        $region17: #{attention_head.3} parent=11 // pred_check
          %p276 = pneg %p192
        $region18: #{attention_head.3} parent=11 // pred_check_branch
          %278 = sbr.rel (%p276) target = $region20
        $region19: #{attention_head.3} parent=11 // pred_region
          %s280 = ssub.s32 16, 16
          %281 = vsyncadd [#allocation12], %s280
          %s283 = sshll.u32 [#allocation11], 4
          %s284 = int_to_ptr.vmem [resolvable:$true] %s283
          %286 = dma.hbm_to_vmem [thread:$0]  %s5, 16, %s284, [#allocation12]
        $region20: #{attention_head.3} parent=11 // pred_fallthru
          _
      $region12: #{attention_head.3} parent=5 // pred_fallthru
        _
      %p287 = scmp.lt.s32.totalorder %s30, 2
      // Predicated region
      $region21: #{attention_head.3} parent=5 // pred_check
        %p288 = pneg %p287
      $region22: #{attention_head.3} parent=5 // pred_check_branch
        %290 = sbr.rel (%p288) target = $region24
      $region23: #{attention_head.3} parent=5 // pred_region
        // Predicated region
        $region25: #{attention_head.3} parent=23 // pred_check
          %p291 = pneg %p64
        $region26: #{attention_head.3} parent=23 // pred_check_branch
          %293 = sbr.rel (%p291) target = $region28
        $region27: #{attention_head.3} parent=23 // pred_region
          %s294 = sand.u32 %s54, 1
          %s295 = scalar_lea.sflag [#allocation3], %s294
          %s296 = sand.u32 %s54, 1
          %s297 = smul.addr %s296, 8
          %s298 = scalar_lea.vmem [#allocation2], %s297
          %s300 = ssub.s32 128, 128
          %301 = vsyncadd %s295, %s300
          %s302 = sadd.s32 %s38, %s37
          %s303 = smul.addr %s302, 128
          %s304 = scalar_lea.hbm %s0, %s303
          %s306 = sshll.u32 %s298, 4
          %s307 = int_to_ptr.vmem [resolvable:$true] %s306
          %309 = dma.hbm_to_vmem [thread:$0]  %s304, 128, %s307, %s295
        $region28: #{attention_head.3} parent=23 // pred_fallthru
          _
        // Predicated region
        $region29: #{attention_head.3} parent=23 // pred_check
          %p310 = pneg %p90
        $region30: #{attention_head.3} parent=23 // pred_check_branch
          %312 = sbr.rel (%p310) target = $region32
        $region31: #{attention_head.3} parent=23 // pred_region
          %s313 = sand.u32 %s30, 1
          %s314 = scalar_lea.sflag [#allocation6], %s313
          %s315 = sand.u32 %s80, 1
          %s316 = smul.addr %s315, 8
          %s317 = scalar_lea.vmem [#allocation5], %s316
          %s319 = ssub.s32 128, 128
          %320 = vsyncadd %s314, %s319
          %s321 = smul.addr %s37, 2
          %s322 = smul.addr %s321, 64
          %s323 = scalar_lea.hbm %s1, %s322
          %s324 = sshll.u32 %s317, 4
          %s325 = int_to_ptr.vmem [resolvable:$true] %s324
          %330 = dma.hbm_to_vmem [thread:$0]  %s323, 128, %s325, %s314, 64, 64, 4
        $region32: #{attention_head.3} parent=23 // pred_fallthru
          _
        // Predicated region
        $region33: #{attention_head.3} parent=23 // pred_check
          %p331 = pneg %p116
        $region34: #{attention_head.3} parent=23 // pred_check_branch
          %333 = sbr.rel (%p331) target = $region36
        $region35: #{attention_head.3} parent=23 // pred_region
          %s334 = sand.u32 %s30, 1
          %s335 = scalar_lea.sflag [#allocation6], %s334
          %s336 = sand.u32 %s106, 1
          %s337 = smul.addr %s336, 4
          %s338 = scalar_lea.vmem [#allocation7], %s337
          %s340 = ssub.s32 64, 64
          %341 = vsyncadd %s335, %s340
          %s342 = smul.addr %s37, 64
          %s343 = scalar_lea.hbm %s2, %s342
          %s345 = sshll.u32 %s338, 4
          %s346 = int_to_ptr.vmem [resolvable:$true] %s345
          %348 = dma.hbm_to_vmem [thread:$0]  %s343, 64, %s346, %s335
        $region36: #{attention_head.3} parent=23 // pred_fallthru
          _
        // Predicated region
        $region37: #{attention_head.3} parent=23 // pred_check
          %p349 = pneg %p144
        $region38: #{attention_head.3} parent=23 // pred_check_branch
          %351 = sbr.rel (%p349) target = $region40
        $region39: #{attention_head.3} parent=23 // pred_region
          %s352 = sand.u32 %s30, 1
          %s353 = scalar_lea.sflag [#allocation9], %s352
          %s354 = sand.u32 %s134, 1
          %s355 = smul.addr %s354, 4
          %s356 = scalar_lea.vmem [#allocation8], %s355
          %s358 = ssub.s32 64, 64
          %359 = vsyncadd %s353, %s358
          %s360 = sadd.s32 %s38, %s37
          %s361 = smul.addr %s360, 64
          %s362 = scalar_lea.hbm %s3, %s361
          %s364 = sshll.u32 %s356, 4
          %s365 = int_to_ptr.vmem [resolvable:$true] %s364
          %367 = dma.hbm_to_vmem [thread:$0]  %s362, 64, %s365, %s353
        $region40: #{attention_head.3} parent=23 // pred_fallthru
          _
      $region24: #{attention_head.3} parent=5 // pred_fallthru
        _
      %p368 = scmp.le.s32.totalorder 1, %s30
      %p369 = scmp.lt.s32.totalorder %s30, 3
      %p370 = pnand %p368, %p369
      %p371 = pneg %p370
      // Predicated region
      $region41: #{attention_head.3} parent=5 // pred_check
        _
      $region42: #{attention_head.3} parent=5 // pred_check_branch
        %373 = sbr.rel (%p370) target = $region44
      $region43: #{attention_head.3} parent=5 // pred_region
        %s374 = ssub.s32 %s30, 1
        %s375 = sand.u32 %s57, 1
        %s376 = scalar_lea.sflag [#allocation3], %s375
        %s377 = sand.u32 %s57, 1
        %s378 = smul.addr %s377, 8
        %s379 = scalar_lea.vmem [#allocation2], %s378
        // Predicated region
        $region45: #{attention_head.3} parent=43 // pred_check
          %p380 = pneg %p70
        $region46: #{attention_head.3} parent=43 // pred_check_branch
          %382 = sbr.rel (%p380) target = $region48
        $region47: #{attention_head.3} parent=43 // pred_region
          %383 = dma.done %s376, 128
        $region48: #{attention_head.3} parent=43 // pred_fallthru
          _
        %s384 = sand.u32 %s35, 1
        %s385 = scalar_lea.sflag [#allocation6], %s384
        %s386 = sand.u32 %s83, 1
        %s387 = smul.addr %s386, 8
        %s388 = scalar_lea.vmem [#allocation5], %s387
        // Predicated region
        $region49: #{attention_head.3} parent=43 // pred_check
          %p389 = pneg %p96
        $region50: #{attention_head.3} parent=43 // pred_check_branch
          %391 = sbr.rel (%p389) target = $region52
        $region51: #{attention_head.3} parent=43 // pred_region
          %392 = dma.done %s385, 128
        $region52: #{attention_head.3} parent=43 // pred_fallthru
          _
        %s393 = sand.u32 %s35, 1
        %s394 = scalar_lea.sflag [#allocation6], %s393
        %s395 = sand.u32 %s109, 1
        %s396 = smul.addr %s395, 4
        %s397 = scalar_lea.vmem [#allocation7], %s396
        // Predicated region
        $region53: #{attention_head.3} parent=43 // pred_check
          %p398 = pneg %p122
        $region54: #{attention_head.3} parent=43 // pred_check_branch
          %400 = sbr.rel (%p398) target = $region56
        $region55: #{attention_head.3} parent=43 // pred_region
          %401 = dma.done %s394, 64
        $region56: #{attention_head.3} parent=43 // pred_fallthru
          _
        %s402 = sand.u32 %s35, 1
        %s403 = scalar_lea.sflag [#allocation9], %s402
        %s404 = sand.u32 %s137, 1
        %s405 = smul.addr %s404, 4
        %s406 = scalar_lea.vmem [#allocation8], %s405
        // Predicated region
        $region57: #{attention_head.3} parent=43 // pred_check
          %p407 = pneg %p150
        $region58: #{attention_head.3} parent=43 // pred_check_branch
          %409 = sbr.rel (%p407) target = $region60
        $region59: #{attention_head.3} parent=43 // pred_region
          %410 = dma.done %s403, 64
        $region60: #{attention_head.3} parent=43 // pred_fallthru
          _
        // Predicated region
        $region61: #{attention_head.3} parent=43 // pred_check
          %p411 = pneg %p171
        $region62: #{attention_head.3} parent=43 // pred_check_branch
          %413 = sbr.rel (%p411) target = $region64
        $region63: #{attention_head.3} parent=43 // pred_region
          %414 = dma.done [#allocation9], 256
        $region64: #{attention_head.3} parent=43 // pred_fallthru
          _
        // Predicated region
        $region65: #{attention_head.3} parent=43 // pred_check
          %p415 = pneg %p192
        $region66: #{attention_head.3} parent=43 // pred_check_branch
          %417 = sbr.rel (%p415) target = $region68
        $region67: #{attention_head.3} parent=43 // pred_region
          %418 = dma.done [#allocation12], 16
        $region68: #{attention_head.3} parent=43 // pred_fallthru
          _
        %s419 = sand.u32 %s57, 1
        %s420 = scalar_lea.sflag [#allocation3], %s419
        %s421 = sand.u32 %s57, 1
        %s422 = smul.addr %s421, 8
        %s423 = scalar_lea.vmem [#allocation2], %s422
        %p424 = pneg %p70
        %p425 = pneg %p67
        %s426 = sand.u32 %s35, 1
        %s427 = scalar_lea.sflag [#allocation6], %s426
        %s428 = sand.u32 %s83, 1
        %s429 = smul.addr %s428, 8
        %s430 = scalar_lea.vmem [#allocation5], %s429
        %p431 = pneg %p96
        %p432 = pneg %p93
        %s433 = sand.u32 %s35, 1
        %s434 = scalar_lea.sflag [#allocation6], %s433
        %s435 = sand.u32 %s109, 1
        %s436 = smul.addr %s435, 4
        %s437 = scalar_lea.vmem [#allocation7], %s436
        %p438 = pneg %p122
        %p439 = pneg %p119
        %s440 = sand.u32 %s35, 1
        %s441 = scalar_lea.sflag [#allocation9], %s440
        %s442 = sand.u32 %s137, 1
        %s443 = smul.addr %s442, 4
        %s444 = scalar_lea.vmem [#allocation8], %s443
        %p445 = pneg %p150
        %p446 = pneg %p147
        %p447 = pneg %p171
        %p448 = pneg %p168
        %p449 = pneg %p192
        %p450 = pneg %p189
        %p451 = pneg %p220
        %p452 = pneg %p217
        %s453 = sand.u32 %s207, 1
        %s454 = scalar_lea.sflag [#allocation4], %s453
        %s455 = sand.u32 %s207, 1
        %s456 = smul.addr %s455, 8
        %s457 = scalar_lea.vmem [#allocation13], %s456
        %p458 = pneg %p248
        %p459 = pneg %p245
        %s460 = sand.u32 %s235, 1
        %s461 = scalar_lea.sflag [#allocation15], %s460
        %s462 = sand.u32 %s235, 1
        %s463 = smul.addr %s462, 8
        %s464 = scalar_lea.vmem [#allocation14], %s463
        %v466 = vld [vmem:[%s379] sm:$0xff]
        %v467 = vpack.c.bf16 %v466, %v466
        %v468 = vld [vmem:[#allocation10] sm:$0xf]
        %v469 = vld [vmem:[#allocation10 + $0x4] sm:$0xf]
        %v470 = vld [vmem:[#allocation10 + $0x8] sm:$0xf]
        %v471 = vld [vmem:[#allocation10 + $0xc] sm:$0xf]
        %v472 = vld [vmem:[#allocation11] sm:$0x1]
        %v474 = vlaneseq
        %v475 = vshrl.u32 %v474, 7
        %v476 = vsub.s32 0, %v475
        %v477 = vrot.slane %v472, %v476
        %v483 = vunpack.c.l.b16 %v468
        %v484 = vunpack.c.l.b16 %v469
        %v485 = vunpack.c.l.b16 %v470
        %v486 = vunpack.c.l.b16 %v471
        %v487 = vpack.c.b16 %v484, %v483
        %v488 = vpack.c.b16 %v486, %v485
        %vm491 = vcmask 261120
        %v493 = vsel %vm491, %v467, 0
        %495 = vmatprep.subr.bf16.mxu0 0
        %496 = vmatpush1.bf16.msra.mxu0 %v487
        %497 = vmatprep.subr.bf16.mxu0 0
        %498 = vmatpush1.bf16.msra.mxu0 %v488
        %499 = vmatprep.subr.bf16.mxu0 0
        %500 = vmatpush1.bf16.msra.mxu0 0
        %501 = vmatprep.subr.bf16.mxu0 0
        %502 = vmatpush1.bf16.msra.mxu0 0
        %503 = vmatprep.subr.bf16.mxu0 0
        %504 = vmatpush1.bf16.msra.mxu0 0
        %505 = vmatprep.subr.bf16.mxu0 0
        %506 = vmatpush1.bf16.msra.mxu0 0
        %507 = vmatprep.subr.bf16.mxu0 0
        %508 = vmatpush1.bf16.msra.mxu0 0
        %509 = vmatprep.subr.bf16.mxu0 0
        %510 = vmatpush1.bf16.msra.mxu0 0
        %511 = vmatprep.subr.bf16.mxu0 0
        %512 = vmatpush1.bf16.msra.mxu0 0
        %513 = vmatprep.subr.bf16.mxu0 0
        %514 = vmatpush1.bf16.msra.mxu0 0
        %515 = vmatprep.subr.bf16.mxu0 0
        %516 = vmatpush1.bf16.msra.mxu0 0
        %517 = vmatprep.subr.bf16.mxu0 0
        %518 = vmatpush1.bf16.msra.mxu0 0
        %519 = vmatprep.subr.bf16.mxu0 0
        %520 = vmatpush1.bf16.msra.mxu0 0
        %521 = vmatprep.subr.bf16.mxu0 0
        %522 = vmatpush1.bf16.msra.mxu0 0
        %523 = vmatprep.subr.bf16.mxu0 0
        %524 = vmatpush1.bf16.msra.mxu0 0
        %525 = vmatprep.subr.bf16.mxu0 0
        %526 = vmatpush1.bf16.msra.mxu0 0
        %527 = vmatprep.mubr.bf16.mxu0 0
        %528 = vmatmul.mubr.bf16.gmra.mrb[0].mxu0 %v493
        %v529 = vpop.f32.mrb[0].mxu0
        %v530 = vadd.f32 %v477, %v529
        %v531 = vpop.f32.mrb[0].mxu0
        %v532 = vpop.f32.mrb[0].mxu0
        %v533 = vpop.f32.mrb[0].mxu0
        %534 = vdwg.mxu0
        %v535 = vmul.f32 %v530, 0.25
        %v536 = vpack.c.bf16 %v535, %v535
        %v537 = vld [vmem:[%s388] sm:$0xf]
        %v538 = vld [vmem:[%s388 + $0x4] sm:$0xf]
        %v539 = vld [vmem:[%s406] sm:$0xf]
        %v540 = vunpack.c.l.bf16 %v539
        %v541 = vmul.f32 %v540, -2.5e+08
        %v544 = vunpack.c.l.b16 %v537
        %v545 = vunpack.c.l.b16 %v538
        %v546 = vpack.c.b16 %v545, %v544
        %vm548 = vcmask 130048
        %v550 = vsel %vm548, %v536, 0
        %552 = vmatprep.subr.bf16.mxu0 0
        %553 = vmatpush1.bf16.msra.mxu0 %v546
        %554 = vmatprep.subr.bf16.mxu0 0
        %555 = vmatpush1.bf16.msra.mxu0 0
        %556 = vmatprep.subr.bf16.mxu0 0
        %557 = vmatpush1.bf16.msra.mxu0 0
        %558 = vmatprep.subr.bf16.mxu0 0
        %559 = vmatpush1.bf16.msra.mxu0 0
        %560 = vmatprep.subr.bf16.mxu0 0
        %561 = vmatpush1.bf16.msra.mxu0 0
        %562 = vmatprep.subr.bf16.mxu0 0
        %563 = vmatpush1.bf16.msra.mxu0 0
        %564 = vmatprep.subr.bf16.mxu0 0
        %565 = vmatpush1.bf16.msra.mxu0 0
        %566 = vmatprep.subr.bf16.mxu0 0
        %567 = vmatpush1.bf16.msra.mxu0 0
        %568 = vmatprep.subr.bf16.mxu0 0
        %569 = vmatpush1.bf16.msra.mxu0 0
        %570 = vmatprep.subr.bf16.mxu0 0
        %571 = vmatpush1.bf16.msra.mxu0 0
        %572 = vmatprep.subr.bf16.mxu0 0
        %573 = vmatpush1.bf16.msra.mxu0 0
        %574 = vmatprep.subr.bf16.mxu0 0
        %575 = vmatpush1.bf16.msra.mxu0 0
        %576 = vmatprep.subr.bf16.mxu0 0
        %577 = vmatpush1.bf16.msra.mxu0 0
        %578 = vmatprep.subr.bf16.mxu0 0
        %579 = vmatpush1.bf16.msra.mxu0 0
        %580 = vmatprep.subr.bf16.mxu0 0
        %581 = vmatpush1.bf16.msra.mxu0 0
        %582 = vmatprep.subr.bf16.mxu0 0
        %583 = vmatpush1.bf16.msra.mxu0 0
        %584 = vmatprep.mubr.bf16.mxu0 0
        %585 = vmatmul.mubr.bf16.gmra.mrb[0].mxu0 %v550
        %v586 = vpop.f32.mrb[0].mxu0
        %v587 = vadd.f32 %v541, %v586
        %v588 = vpop.f32.mrb[0].mxu0
        %v589 = vpop.f32.mrb[0].mxu0
        %v590 = vpop.f32.mrb[0].mxu0
        %591 = vdwg.mxu0
        %vm592 = vcmask 64512
        %v593 = vsel %vm592, %v587, -inf
        %594 = vmax.xlane.f32.xlu0 %v593
        %v595 = vpop.xlane.xlu0 %594
        %v596 = vsub.f32 %v587, %v595
        %v597 = vmul.f32 %v596, 1.442695
        %v598 = vpow.pop %v597
        %v599 = vsel %vm592, %v598, 0.0
        %600 = vadd.xlane.f32.xlu0 %v599
        %v601 = vpop.xlane.xlu0 %600
        %v602 = vrcp.pop %v601
        %v603 = vmul.f32 %v598, %v602
        %v604 = vpack.c.bf16 %v603, %v603
        %v605 = vld [vmem:[%s397] sm:$0xf]
        %v607 = vsel %vm592, %v604, 0
        %vm609 = vcmask 1043456
        %v611 = vsel %vm609, %v605, 0
        %613 = vmatprep.subr.bf16.mxu0 0
        %614 = vmatpush1.bf16.msra.mxu0 %v611
        %615 = vmatprep.subr.bf16.mxu0 0
        %616 = vmatpush1.bf16.msra.mxu0 0
        %617 = vmatprep.subr.bf16.mxu0 0
        %618 = vmatpush1.bf16.msra.mxu0 0
        %619 = vmatprep.subr.bf16.mxu0 0
        %620 = vmatpush1.bf16.msra.mxu0 0
        %621 = vmatprep.subr.bf16.mxu0 0
        %622 = vmatpush1.bf16.msra.mxu0 0
        %623 = vmatprep.subr.bf16.mxu0 0
        %624 = vmatpush1.bf16.msra.mxu0 0
        %625 = vmatprep.subr.bf16.mxu0 0
        %626 = vmatpush1.bf16.msra.mxu0 0
        %627 = vmatprep.subr.bf16.mxu0 0
        %628 = vmatpush1.bf16.msra.mxu0 0
        %629 = vmatprep.subr.bf16.mxu0 0
        %630 = vmatpush1.bf16.msra.mxu0 0
        %631 = vmatprep.subr.bf16.mxu0 0
        %632 = vmatpush1.bf16.msra.mxu0 0
        %633 = vmatprep.subr.bf16.mxu0 0
        %634 = vmatpush1.bf16.msra.mxu0 0
        %635 = vmatprep.subr.bf16.mxu0 0
        %636 = vmatpush1.bf16.msra.mxu0 0
        %637 = vmatprep.subr.bf16.mxu0 0
        %638 = vmatpush1.bf16.msra.mxu0 0
        %639 = vmatprep.subr.bf16.mxu0 0
        %640 = vmatpush1.bf16.msra.mxu0 0
        %641 = vmatprep.subr.bf16.mxu0 0
        %642 = vmatpush1.bf16.msra.mxu0 0
        %643 = vmatprep.subr.bf16.mxu0 0
        %644 = vmatpush1.bf16.msra.mxu0 0
        %645 = vmatprep.mubr.bf16.mxu0 0
        %646 = vmatmul.mubr.bf16.gmra.mrb[0].mxu0 %v607
        %v647 = vpop.f32.mrb[0].mxu0
        %v648 = vadd.f32 0.0, %v647
        %v649 = vpop.f32.mrb[0].mxu0
        %v650 = vpop.f32.mrb[0].mxu0
        %v651 = vpop.f32.mrb[0].mxu0
        %652 = vdwg.mxu0
        %653 = vst.msk [vmem:[%s457] sm:$0xff] %vm548, %v648
        %654 = vst.msk [vmem:[%s464] sm:$0xff] %vm592, %v603
        %s655 = sand.u32 %s207, 1
        %s656 = scalar_lea.sflag [#allocation4], %s655
        %s657 = sand.u32 %s207, 1
        %s658 = smul.addr %s657, 8
        %s659 = scalar_lea.vmem [#allocation13], %s658
        %s660 = sand.u32 %s235, 1
        %s661 = scalar_lea.sflag [#allocation15], %s660
        %s662 = sand.u32 %s235, 1
        %s663 = smul.addr %s662, 8
        %s664 = scalar_lea.vmem [#allocation14], %s663
        // Predicated region
        $region69: #{attention_head.3} parent=43 // pred_check
          %p665 = pneg %p217
        $region70: #{attention_head.3} parent=43 // pred_check_branch
          %667 = sbr.rel (%p665) target = $region72
        $region71: #{attention_head.3} parent=43 // pred_region
          %s669 = ssub.s32 128, 128
          %670 = vsyncadd %s656, %s669
          %s671 = sadd.s32 %s40, %s39
          %s672 = smul.addr %s671, 128
          %s673 = scalar_lea.hbm %s6, %s672
          %s675 = sshll.u32 %s659, 4
          %s676 = int_to_ptr.vmem [resolvable:$true] %s675
          %678 = dma.vmem_to_hbm [thread:$0]  %s676, 128, %s673, %s656
        $region72: #{attention_head.3} parent=43 // pred_fallthru
          _
        // Predicated region
        $region73: #{attention_head.3} parent=43 // pred_check
          %p679 = pneg %p245
        $region74: #{attention_head.3} parent=43 // pred_check_branch
          %681 = sbr.rel (%p679) target = $region76
        $region75: #{attention_head.3} parent=43 // pred_region
          %s683 = ssub.s32 128, 128
          %684 = vsyncadd %s661, %s683
          %s685 = sadd.s32 %s40, %s39
          %s686 = smul.addr %s685, 128
          %s687 = scalar_lea.hbm %s7, %s686
          %s689 = sshll.u32 %s664, 4
          %s690 = int_to_ptr.vmem [resolvable:$true] %s689
          %692 = dma.vmem_to_hbm [thread:$0]  %s690, 128, %s687, %s661
        $region76: #{attention_head.3} parent=43 // pred_fallthru
          _
      $region44: #{attention_head.3} parent=5 // pred_fallthru
        _
      %p693 = scmp.le.s32.totalorder 2, %s30
      // Predicated region
      $region77: #{attention_head.3} parent=5 // pred_check
        %p694 = pneg %p693
      $region78: #{attention_head.3} parent=5 // pred_check_branch
        %696 = sbr.rel (%p694) target = $region80
      $region79: #{attention_head.3} parent=5 // pred_region
        %s697 = ssub.s32 %s30, 2
        // Predicated region
        $region81: #{attention_head.3} parent=79 // pred_check
          %p698 = pneg %p223
        $region82: #{attention_head.3} parent=79 // pred_check_branch
          %700 = sbr.rel (%p698) target = $region84
        $region83: #{attention_head.3} parent=79 // pred_region
          %s701 = sand.u32 %s208, 1
          %s702 = scalar_lea.sflag [#allocation4], %s701
          %s703 = sand.u32 %s208, 1
          %s704 = smul.addr %s703, 8
          %s705 = scalar_lea.vmem [#allocation13], %s704
          %706 = dma.done %s702, 128
        $region84: #{attention_head.3} parent=79 // pred_fallthru
          _
        // Predicated region
        $region85: #{attention_head.3} parent=79 // pred_check
          %p707 = pneg %p251
        $region86: #{attention_head.3} parent=79 // pred_check_branch
          %709 = sbr.rel (%p707) target = $region88
        $region87: #{attention_head.3} parent=79 // pred_region
          %s710 = sand.u32 %s236, 1
          %s711 = scalar_lea.sflag [#allocation15], %s710
          %s712 = sand.u32 %s236, 1
          %s713 = smul.addr %s712, 8
          %s714 = scalar_lea.vmem [#allocation14], %s713
          %715 = dma.done %s711, 128
        $region88: #{attention_head.3} parent=79 // pred_fallthru
          _
      $region80: #{attention_head.3} parent=5 // pred_fallthru
        _
    $region6: #{attention_head.3} parent=1 // loop_footer
      %s34 = sadd.s32 1, %s30
    $region7: #{attention_head.3} parent=1 // loop_footer_branch
      %29 = sbr.rel target = $region3
    $region8: #{attention_head.3} parent=1 // loop_exit
      _
    %716 = vsyncpa [#allocation3], 1
    %s717 = scalar_lea.sflag [#allocation3], 1
    %718 = vsyncpa %s717, 1
    %719 = vsyncpa [#allocation6], 1
    %s720 = scalar_lea.sflag [#allocation6], 1
    %721 = vsyncpa %s720, 1
    %722 = vsyncpa [#allocation9], 1
    %s723 = scalar_lea.sflag [#allocation9], 1
    %724 = vsyncpa %s723, 1
    %725 = vsyncpa [#allocation12], 1
    %726 = vsyncpa [#allocation4], 1
    %s727 = scalar_lea.sflag [#allocation4], 1
    %728 = vsyncpa %s727, 1
    %729 = vsyncpa [#allocation15], 1
    %s730 = scalar_lea.sflag [#allocation15], 1
    %731 = vsyncpa %s730, 1

// kernel: attention_head.2
$region0: #{attention_head.2}
  #allocation0 [shape = 'u32[]', space=smem, size = 0x4, offset = 0x4, fixed_abs, tag = 'smem constant byte address 0x4 - core index']
  #allocation1 [shape = 'u32[144,128]{1,0:T(1,128)}', space=vmem, size = 0x12000, scoped, tag = 'internal scratch']
  %s0 = inlined_call_operand.hbm [shape: f32[2,8,32], index: 0, kind: input, shape index: {}]
  %s1 = inlined_call_operand.hbm [shape: f32[2,8,32], index: 1, kind: input, shape index: {}]
  %s2 = inlined_call_operand.hbm [shape: bf16[32,16], index: 2, kind: input, shape index: {}]
  %s3 = inlined_call_operand.hbm [shape: f32[1,16], index: 3, kind: input, shape index: {}]
  %s4 = inlined_call_operand.hbm [shape: bf16[32,16], index: 4, kind: input, shape index: {}]
  %s5 = inlined_call_operand.hbm [shape: f32[1,16], index: 5, kind: input, shape index: {}]
  %s6 = inlined_call_operand.hbm [shape: bf16[2,16,8], index: 6, kind: output, shape index: {0}]
  %s7 = inlined_call_operand.hbm [shape: bf16[2,8,16], index: 7, kind: output, shape index: {1}]
  %8 = xla_tuple %s6, %s7
  %s9 = sld [smem:[#allocation0]]
  $region89: #{attention_head.2} parent=0
    _
  %s11 = ssub.s32 1, %s9
  %s12 = scalar_select 0, %s11, %s9
  $region1: #{attention_head.2} parent=0
    #allocation2 [shape = 'u8[8192]{0}', space=vmem, size = 0x2000, scoped, tag = 'input window, operand 0']
    #allocation3 [shape = 's32[2]{0}', space=sflag, size = 0x8, scoped, tag = 'scoped memory for attention_head.2']
    #allocation4 [shape = 's32[2]{0}', space=sflag, size = 0x8, scoped, tag = 'scoped memory for attention_head.2']
    #allocation5 [shape = 'u8[8192]{0}', space=vmem, size = 0x2000, scoped, tag = 'input window, operand 1']
    #allocation6 [shape = 's32[2]{0}', space=sflag, size = 0x8, scoped, tag = 'scoped memory for attention_head.2']
    #allocation7 [shape = 'u8[8192]{0}', space=vmem, size = 0x2000, scoped, tag = 'input window, operand 2, single buffered']
    #allocation8 [shape = 'u8[512]{0}', space=vmem, size = 0x400, scoped, tag = 'input window, operand 3, single buffered']
    #allocation9 [shape = 's32[1]{0}', space=sflag, size = 0x4, scoped, tag = 'scoped memory for attention_head.2']
    #allocation10 [shape = 'u8[8192]{0}', space=vmem, size = 0x2000, scoped, tag = 'input window, operand 4, single buffered']
    #allocation11 [shape = 'u8[512]{0}', space=vmem, size = 0x400, scoped, tag = 'input window, operand 5, single buffered']
    #allocation12 [shape = 's32[1]{0}', space=sflag, size = 0x4, scoped, tag = 'scoped memory for attention_head.2']
    #allocation13 [shape = 'u8[8192]{0}', space=vmem, size = 0x2000, scoped, tag = 'output window, operand 0']
    #allocation14 [shape = 'u8[4096]{0}', space=vmem, size = 0x1000, scoped, tag = 'output window, operand 1']
    #allocation15 [shape = 's32[2]{0}', space=sflag, size = 0x8, scoped, tag = 'scoped memory for attention_head.2']
    %13 = vsyncpa [#allocation3], 0
    %s14 = scalar_lea.sflag [#allocation3], 1
    %15 = vsyncpa %s14, 0
    %16 = vsyncpa [#allocation6], 0
    %s17 = scalar_lea.sflag [#allocation6], 1
    %18 = vsyncpa %s17, 0
    %19 = vsyncpa [#allocation9], 0
    %20 = vsyncpa [#allocation12], 0
    %21 = vsyncpa [#allocation4], 0
    %s22 = scalar_lea.sflag [#allocation4], 1
    %23 = vsyncpa %s22, 0
    %24 = vsyncpa [#allocation15], 0
    %s25 = scalar_lea.sflag [#allocation15], 1
    %26 = vsyncpa %s25, 0
    loop: start=0, step=1, limit=4
    $region2: #{attention_head.2} parent=1 // loop_pre_header
      _
    $region3: #{attention_head.2} parent=1 // loop_header
      %s28 = sphi 0, %s32
      %p29 = scmp.ge.s32.totalorder %s28, 4
      %s35 = sphi 0, %s47
      %s36 = sphi 0, %s43
      %s37 = sphi 0, %s35
      %s38 = sphi 0, %s36
      %s39 = sphi 0, %s37
      %s40 = sphi 0, %s38
      %s52 = sphi 0, %s54
      %s55 = sphi 0, %s52
      %s56 = sphi 0, %s55
      %s72 = sphi 0, %s56
      %s80 = sphi 0, %s82
      %s83 = sphi 0, %s80
      %s84 = sphi 0, %s83
      %s100 = sphi 0, %s84
      %s104 = sphi 0, %s104
      %s106 = sphi 0, %s104
      %s107 = sphi 0, %s106
      %s121 = sphi 0, %s107
      %s125 = sphi 0, %s125
      %s127 = sphi 0, %s125
      %s128 = sphi 0, %s127
      %s142 = sphi 0, %s128
      %s146 = sphi 0, %s146
      %s148 = sphi 0, %s146
      %s149 = sphi 0, %s148
      %s163 = sphi 0, %s149
      %s167 = sphi 0, %s167
      %s169 = sphi 0, %s167
      %s170 = sphi 0, %s169
      %s184 = sphi 0, %s170
      %s192 = sphi 0, %s194
      %s195 = sphi 0, %s192
      %s196 = sphi 0, %s195
      %s212 = sphi 0, %s196
      %s220 = sphi 0, %s222
      %s223 = sphi 0, %s220
      %s224 = sphi 0, %s223
      %s240 = sphi 0, %s224
    $region4: #{attention_head.2} parent=1 // loop_header_branch
      %31 = sbr.rel (%p29) target = $region8
    $region5: #{attention_head.2} parent=1 // loop_body
      %s33 = ssub.s32 %s28, 1
      %s34 = ssub.s32 %s28, 2
      %s41 = sadd.s32 1, %s36
      %p42 = scmp.ge.s32.totalorder %s41, 1
      %s43 = scalar_select %p42, 0, %s41
      %s44 = sadd.s32 1, %s35
      %s45 = scalar_select %p42, %s44, %s35
      %p46 = scmp.ge.s32.totalorder %s45, 2
      %s47 = scalar_select %p46, 0, %s45
      %s48 = ssub.s32 %s35, %s47
      %s49 = ssub.s32 %s36, %s43
      %s50 = sor.u32 %s48, %s49
      %p51 = scmp.eq.s32.totalorder %s50, 0
      %s53 = sadd.s32 %s52, 1
      %s54 = scalar_select %p51, %s52, %s53
      %p57 = pneg %p51
      %p58 = scmp.eq.s32.totalorder %s28, 1
      %p59 = por %p57, %p58
      %p60 = scmp.ne.s32.totalorder %s52, %s55
      %p61 = scmp.eq.s32.totalorder %s28, 0
      %p62 = por %p60, %p61
      %p63 = scmp.ne.s32.totalorder %s52, %s55
      %p64 = scmp.eq.s32.totalorder %s33, 1
      %p65 = por %p63, %p64
      %p66 = scmp.ne.s32.totalorder %s55, %s56
      %p67 = scmp.eq.s32.totalorder %s33, 0
      %p68 = por %p66, %p67
      %p69 = scmp.ne.s32.totalorder %s55, %s56
      %p70 = scmp.eq.s32.totalorder %s34, 1
      %p71 = por %p69, %p70
      %p73 = scmp.ne.s32.totalorder %s56, %s72
      %p74 = scmp.eq.s32.totalorder %s34, 0
      %p75 = por %p73, %p74
      %s76 = ssub.s32 %s35, %s47
      %s77 = ssub.s32 %s36, %s43
      %s78 = sor.u32 %s76, %s77
      %p79 = scmp.eq.s32.totalorder %s78, 0
      %s81 = sadd.s32 %s80, 1
      %s82 = scalar_select %p79, %s80, %s81
      %p85 = pneg %p79
      %p86 = scmp.eq.s32.totalorder %s28, 1
      %p87 = por %p85, %p86
      %p88 = scmp.ne.s32.totalorder %s80, %s83
      %p89 = scmp.eq.s32.totalorder %s28, 0
      %p90 = por %p88, %p89
      %p91 = scmp.ne.s32.totalorder %s80, %s83
      %p92 = scmp.eq.s32.totalorder %s33, 1
      %p93 = por %p91, %p92
      %p94 = scmp.ne.s32.totalorder %s83, %s84
      %p95 = scmp.eq.s32.totalorder %s33, 0
      %p96 = por %p94, %p95
      %p97 = scmp.ne.s32.totalorder %s83, %s84
      %p98 = scmp.eq.s32.totalorder %s34, 1
      %p99 = por %p97, %p98
      %p101 = scmp.ne.s32.totalorder %s84, %s100
      %p102 = scmp.eq.s32.totalorder %s34, 0
      %p103 = por %p101, %p102
      %s105 = sadd.s32 %s104, 1
      %p108 = scmp.eq.s32.totalorder %s28, 1
      %p109 = scmp.ne.s32.totalorder %s104, %s106
      %p110 = scmp.eq.s32.totalorder %s28, 0
      %p111 = por %p109, %p110
      %p112 = scmp.ne.s32.totalorder %s104, %s106
      %p113 = scmp.eq.s32.totalorder %s33, 1
      %p114 = por %p112, %p113
      %p115 = scmp.ne.s32.totalorder %s106, %s107
      %p116 = scmp.eq.s32.totalorder %s33, 0
      %p117 = por %p115, %p116
      %p118 = scmp.ne.s32.totalorder %s106, %s107
      %p119 = scmp.eq.s32.totalorder %s34, 1
      %p120 = por %p118, %p119
      %p122 = scmp.ne.s32.totalorder %s107, %s121
      %p123 = scmp.eq.s32.totalorder %s34, 0
      %p124 = por %p122, %p123
      %s126 = sadd.s32 %s125, 1
      %p129 = scmp.eq.s32.totalorder %s28, 1
      %p130 = scmp.ne.s32.totalorder %s125, %s127
      %p131 = scmp.eq.s32.totalorder %s28, 0
      %p132 = por %p130, %p131
      %p133 = scmp.ne.s32.totalorder %s125, %s127
      %p134 = scmp.eq.s32.totalorder %s33, 1
      %p135 = por %p133, %p134
      %p136 = scmp.ne.s32.totalorder %s127, %s128
      %p137 = scmp.eq.s32.totalorder %s33, 0
      %p138 = por %p136, %p137
      %p139 = scmp.ne.s32.totalorder %s127, %s128
      %p140 = scmp.eq.s32.totalorder %s34, 1
      %p141 = por %p139, %p140
      %p143 = scmp.ne.s32.totalorder %s128, %s142
      %p144 = scmp.eq.s32.totalorder %s34, 0
      %p145 = por %p143, %p144
      %s147 = sadd.s32 %s146, 1
      %p150 = scmp.eq.s32.totalorder %s28, 1
      %p151 = scmp.ne.s32.totalorder %s146, %s148
      %p152 = scmp.eq.s32.totalorder %s28, 0
      %p153 = por %p151, %p152
      %p154 = scmp.ne.s32.totalorder %s146, %s148
      %p155 = scmp.eq.s32.totalorder %s33, 1
      %p156 = por %p154, %p155
      %p157 = scmp.ne.s32.totalorder %s148, %s149
      %p158 = scmp.eq.s32.totalorder %s33, 0
      %p159 = por %p157, %p158
      %p160 = scmp.ne.s32.totalorder %s148, %s149
      %p161 = scmp.eq.s32.totalorder %s34, 1
      %p162 = por %p160, %p161
      %p164 = scmp.ne.s32.totalorder %s149, %s163
      %p165 = scmp.eq.s32.totalorder %s34, 0
      %p166 = por %p164, %p165
      %s168 = sadd.s32 %s167, 1
      %p171 = scmp.eq.s32.totalorder %s28, 1
      %p172 = scmp.ne.s32.totalorder %s167, %s169
      %p173 = scmp.eq.s32.totalorder %s28, 0
      %p174 = por %p172, %p173
      %p175 = scmp.ne.s32.totalorder %s167, %s169
      %p176 = scmp.eq.s32.totalorder %s33, 1
      %p177 = por %p175, %p176
      %p178 = scmp.ne.s32.totalorder %s169, %s170
      %p179 = scmp.eq.s32.totalorder %s33, 0
      %p180 = por %p178, %p179
      %p181 = scmp.ne.s32.totalorder %s169, %s170
      %p182 = scmp.eq.s32.totalorder %s34, 1
      %p183 = por %p181, %p182
      %p185 = scmp.ne.s32.totalorder %s170, %s184
      %p186 = scmp.eq.s32.totalorder %s34, 0
      %p187 = por %p185, %p186
      %s188 = ssub.s32 %s35, %s47
      %s189 = ssub.s32 %s36, %s43
      %s190 = sor.u32 %s188, %s189
      %p191 = scmp.eq.s32.totalorder %s190, 0
      %s193 = sadd.s32 %s192, 1
      %s194 = scalar_select %p191, %s192, %s193
      %p197 = pneg %p191
      %p198 = scmp.eq.s32.totalorder %s28, 1
      %p199 = por %p197, %p198
      %p200 = scmp.ne.s32.totalorder %s192, %s195
      %p201 = scmp.eq.s32.totalorder %s28, 0
      %p202 = por %p200, %p201
      %p203 = scmp.ne.s32.totalorder %s192, %s195
      %p204 = scmp.eq.s32.totalorder %s33, 1
      %p205 = por %p203, %p204
      %p206 = scmp.ne.s32.totalorder %s195, %s196
      %p207 = scmp.eq.s32.totalorder %s33, 0
      %p208 = por %p206, %p207
      %p209 = scmp.ne.s32.totalorder %s195, %s196
      %p210 = scmp.eq.s32.totalorder %s34, 1
      %p211 = por %p209, %p210
      %p213 = scmp.ne.s32.totalorder %s196, %s212
      %p214 = scmp.eq.s32.totalorder %s34, 0
      %p215 = por %p213, %p214
      %s216 = ssub.s32 %s35, %s47
      %s217 = ssub.s32 %s36, %s43
      %s218 = sor.u32 %s216, %s217
      %p219 = scmp.eq.s32.totalorder %s218, 0
      %s221 = sadd.s32 %s220, 1
      %s222 = scalar_select %p219, %s220, %s221
      %p225 = pneg %p219
      %p226 = scmp.eq.s32.totalorder %s28, 1
      %p227 = por %p225, %p226
      %p228 = scmp.ne.s32.totalorder %s220, %s223
      %p229 = scmp.eq.s32.totalorder %s28, 0
      %p230 = por %p228, %p229
      %p231 = scmp.ne.s32.totalorder %s220, %s223
      %p232 = scmp.eq.s32.totalorder %s33, 1
      %p233 = por %p231, %p232
      %p234 = scmp.ne.s32.totalorder %s223, %s224
      %p235 = scmp.eq.s32.totalorder %s33, 0
      %p236 = por %p234, %p235
      %p237 = scmp.ne.s32.totalorder %s223, %s224
      %p238 = scmp.eq.s32.totalorder %s34, 1
      %p239 = por %p237, %p238
      %p241 = scmp.ne.s32.totalorder %s224, %s240
      %p242 = scmp.eq.s32.totalorder %s34, 0
      %p243 = por %p241, %p242
      %p244 = scmp.le.s32.totalorder 1, %s28
      %p245 = scmp.lt.s32.totalorder %s28, 3
      %p246 = pnand %p244, %p245
      %p247 = pneg %p246
      // Predicated region
      $region9: #{attention_head.2} parent=5 // pred_check
        _
      $region10: #{attention_head.2} parent=5 // pred_check_branch
        %249 = sbr.rel (%p246) target = $region12
      $region11: #{attention_head.2} parent=5 // pred_region
        %s250 = ssub.s32 %s28, 1
        // Predicated region
        $region13: #{attention_head.2} parent=11 // pred_check
          %p251 = pneg %p117
        $region14: #{attention_head.2} parent=11 // pred_check_branch
          %253 = sbr.rel (%p251) target = $region16
        $region15: #{attention_head.2} parent=11 // pred_region
          %s255 = ssub.s32 256, 256
          %256 = vsyncadd [#allocation6], %s255
          %s257 = sshll.u32 [#allocation7], 4
          %s258 = int_to_ptr.vmem [resolvable:$true] %s257
          %263 = dma.hbm_to_vmem [thread:$0]  %s2, 256, %s258, [#allocation6], 64, 64, 4
        $region16: #{attention_head.2} parent=11 // pred_fallthru
          _
        // Predicated region
        $region17: #{attention_head.2} parent=11 // pred_check
          %p264 = pneg %p138
        $region18: #{attention_head.2} parent=11 // pred_check_branch
          %266 = sbr.rel (%p264) target = $region20
        $region19: #{attention_head.2} parent=11 // pred_region
          %s268 = ssub.s32 16, 16
          %269 = vsyncadd [#allocation9], %s268
          %s271 = sshll.u32 [#allocation8], 4
          %s272 = int_to_ptr.vmem [resolvable:$true] %s271
          %274 = dma.hbm_to_vmem [thread:$0]  %s3, 16, %s272, [#allocation9]
        $region20: #{attention_head.2} parent=11 // pred_fallthru
          _
        // Predicated region
        $region21: #{attention_head.2} parent=11 // pred_check
          %p275 = pneg %p159
        $region22: #{attention_head.2} parent=11 // pred_check_branch
          %277 = sbr.rel (%p275) target = $region24
        $region23: #{attention_head.2} parent=11 // pred_region
          %s279 = ssub.s32 256, 256
          %280 = vsyncadd [#allocation9], %s279
          %s281 = sshll.u32 [#allocation10], 4
          %s282 = int_to_ptr.vmem [resolvable:$true] %s281
          %287 = dma.hbm_to_vmem [thread:$0]  %s4, 256, %s282, [#allocation9], 64, 64, 4
        $region24: #{attention_head.2} parent=11 // pred_fallthru
          _
        // Predicated region
        $region25: #{attention_head.2} parent=11 // pred_check
          %p288 = pneg %p180
        $region26: #{attention_head.2} parent=11 // pred_check_branch
          %290 = sbr.rel (%p288) target = $region28
        $region27: #{attention_head.2} parent=11 // pred_region
          %s292 = ssub.s32 16, 16
          %293 = vsyncadd [#allocation12], %s292
          %s295 = sshll.u32 [#allocation11], 4
          %s296 = int_to_ptr.vmem [resolvable:$true] %s295
          %298 = dma.hbm_to_vmem [thread:$0]  %s5, 16, %s296, [#allocation12]
        $region28: #{attention_head.2} parent=11 // pred_fallthru
          _
      $region12: #{attention_head.2} parent=5 // pred_fallthru
        _
      %p299 = scmp.lt.s32.totalorder %s28, 2
      // Predicated region
      $region29: #{attention_head.2} parent=5 // pred_check
        %p300 = pneg %p299
      $region30: #{attention_head.2} parent=5 // pred_check_branch
        %302 = sbr.rel (%p300) target = $region32
      $region31: #{attention_head.2} parent=5 // pred_region
        // Predicated region
        $region33: #{attention_head.2} parent=31 // pred_check
          %p303 = pneg %p62
        $region34: #{attention_head.2} parent=31 // pred_check_branch
          %305 = sbr.rel (%p303) target = $region36
        $region35: #{attention_head.2} parent=31 // pred_region
          %s306 = sand.u32 %s52, 1
          %s307 = scalar_lea.sflag [#allocation3], %s306
          %s308 = sand.u32 %s52, 1
          %s309 = smul.addr %s308, 8
          %s310 = scalar_lea.vmem [#allocation2], %s309
          %s312 = ssub.s32 128, 128
          %313 = vsyncadd %s307, %s312
          %s314 = sadd.s32 %s36, %s35
          %s315 = smul.addr %s314, 128
          %s316 = scalar_lea.hbm %s0, %s315
          %s318 = sshll.u32 %s310, 4
          %s319 = int_to_ptr.vmem [resolvable:$true] %s318
          %321 = dma.hbm_to_vmem [thread:$0]  %s316, 128, %s319, %s307
        $region36: #{attention_head.2} parent=31 // pred_fallthru
          _
        // Predicated region
        $region37: #{attention_head.2} parent=31 // pred_check
          %p322 = pneg %p90
        $region38: #{attention_head.2} parent=31 // pred_check_branch
          %324 = sbr.rel (%p322) target = $region40
        $region39: #{attention_head.2} parent=31 // pred_region
          %s325 = sand.u32 %s28, 1
          %s326 = scalar_lea.sflag [#allocation6], %s325
          %s327 = sand.u32 %s80, 1
          %s328 = smul.addr %s327, 8
          %s329 = scalar_lea.vmem [#allocation5], %s328
          %s331 = ssub.s32 128, 128
          %332 = vsyncadd %s326, %s331
          %s333 = sadd.s32 %s36, %s35
          %s334 = smul.addr %s333, 128
          %s335 = scalar_lea.hbm %s1, %s334
          %s337 = sshll.u32 %s329, 4
          %s338 = int_to_ptr.vmem [resolvable:$true] %s337
          %340 = dma.hbm_to_vmem [thread:$0]  %s335, 128, %s338, %s326
        $region40: #{attention_head.2} parent=31 // pred_fallthru
          _
      $region32: #{attention_head.2} parent=5 // pred_fallthru
        _
      %p341 = scmp.le.s32.totalorder 1, %s28
      %p342 = scmp.lt.s32.totalorder %s28, 3
      %p343 = pnand %p341, %p342
      %p344 = pneg %p343
      // Predicated region
      $region41: #{attention_head.2} parent=5 // pred_check
        _
      $region42: #{attention_head.2} parent=5 // pred_check_branch
        %346 = sbr.rel (%p343) target = $region44
      $region43: #{attention_head.2} parent=5 // pred_region
        %s347 = ssub.s32 %s28, 1
        %s348 = sand.u32 %s55, 1
        %s349 = scalar_lea.sflag [#allocation3], %s348
        %s350 = sand.u32 %s55, 1
        %s351 = smul.addr %s350, 8
        %s352 = scalar_lea.vmem [#allocation2], %s351
        // Predicated region
        $region45: #{attention_head.2} parent=43 // pred_check
          %p353 = pneg %p68
        $region46: #{attention_head.2} parent=43 // pred_check_branch
          %355 = sbr.rel (%p353) target = $region48
        $region47: #{attention_head.2} parent=43 // pred_region
          %356 = dma.done %s349, 128
        $region48: #{attention_head.2} parent=43 // pred_fallthru
          _
        %s357 = sand.u32 %s33, 1
        %s358 = scalar_lea.sflag [#allocation6], %s357
        %s359 = sand.u32 %s83, 1
        %s360 = smul.addr %s359, 8
        %s361 = scalar_lea.vmem [#allocation5], %s360
        // Predicated region
        $region49: #{attention_head.2} parent=43 // pred_check
          %p362 = pneg %p96
        $region50: #{attention_head.2} parent=43 // pred_check_branch
          %364 = sbr.rel (%p362) target = $region52
        $region51: #{attention_head.2} parent=43 // pred_region
          %365 = dma.done %s358, 128
        $region52: #{attention_head.2} parent=43 // pred_fallthru
          _
        // Predicated region
        $region53: #{attention_head.2} parent=43 // pred_check
          %p366 = pneg %p117
        $region54: #{attention_head.2} parent=43 // pred_check_branch
          %368 = sbr.rel (%p366) target = $region56
        $region55: #{attention_head.2} parent=43 // pred_region
          %369 = dma.done [#allocation6], 256
        $region56: #{attention_head.2} parent=43 // pred_fallthru
          _
        // Predicated region
        $region57: #{attention_head.2} parent=43 // pred_check
          %p370 = pneg %p138
        $region58: #{attention_head.2} parent=43 // pred_check_branch
          %372 = sbr.rel (%p370) target = $region60
        $region59: #{attention_head.2} parent=43 // pred_region
          %373 = dma.done [#allocation9], 16
        $region60: #{attention_head.2} parent=43 // pred_fallthru
          _
        // Predicated region
        $region61: #{attention_head.2} parent=43 // pred_check
          %p374 = pneg %p159
        $region62: #{attention_head.2} parent=43 // pred_check_branch
          %376 = sbr.rel (%p374) target = $region64
        $region63: #{attention_head.2} parent=43 // pred_region
          %377 = dma.done [#allocation9], 256
        $region64: #{attention_head.2} parent=43 // pred_fallthru
          _
        // Predicated region
        $region65: #{attention_head.2} parent=43 // pred_check
          %p378 = pneg %p180
        $region66: #{attention_head.2} parent=43 // pred_check_branch
          %380 = sbr.rel (%p378) target = $region68
        $region67: #{attention_head.2} parent=43 // pred_region
          %381 = dma.done [#allocation12], 16
        $region68: #{attention_head.2} parent=43 // pred_fallthru
          _
        %s382 = sand.u32 %s55, 1
        %s383 = scalar_lea.sflag [#allocation3], %s382
        %s384 = sand.u32 %s55, 1
        %s385 = smul.addr %s384, 8
        %s386 = scalar_lea.vmem [#allocation2], %s385
        %p387 = pneg %p68
        %p388 = pneg %p65
        %s389 = sand.u32 %s33, 1
        %s390 = scalar_lea.sflag [#allocation6], %s389
        %s391 = sand.u32 %s83, 1
        %s392 = smul.addr %s391, 8
        %s393 = scalar_lea.vmem [#allocation5], %s392
        %p394 = pneg %p96
        %p395 = pneg %p93
        %p396 = pneg %p117
        %p397 = pneg %p114
        %p398 = pneg %p138
        %p399 = pneg %p135
        %p400 = pneg %p159
        %p401 = pneg %p156
        %p402 = pneg %p180
        %p403 = pneg %p177
        %p404 = pneg %p208
        %p405 = pneg %p205
        %s406 = sand.u32 %s195, 1
        %s407 = scalar_lea.sflag [#allocation4], %s406
        %s408 = sand.u32 %s195, 1
        %s409 = smul.addr %s408, 8
        %s410 = scalar_lea.vmem [#allocation13], %s409
        %p411 = pneg %p236
        %p412 = pneg %p233
        %s413 = sand.u32 %s223, 1
        %s414 = scalar_lea.sflag [#allocation15], %s413
        %s415 = sand.u32 %s223, 1
        %s416 = smul.addr %s415, 4
        %s417 = scalar_lea.vmem [#allocation14], %s416
        %v419 = vld [vmem:[%s352] sm:$0xff]
        %v420 = vpack.c.bf16 %v419, %v419
        %v421 = vld [vmem:[#allocation7] sm:$0xf]
        %v422 = vld [vmem:[#allocation7 + $0x4] sm:$0xf]
        %v423 = vld [vmem:[#allocation7 + $0x8] sm:$0xf]
        %v424 = vld [vmem:[#allocation7 + $0xc] sm:$0xf]
        %v425 = vld [vmem:[#allocation8] sm:$0x1]
        %v427 = vlaneseq
        %v428 = vshrl.u32 %v427, 7
        %v429 = vsub.s32 0, %v428
        %v430 = vrot.slane %v425, %v429
        %v436 = vunpack.c.l.b16 %v421
        %v437 = vunpack.c.l.b16 %v422
        %v438 = vunpack.c.l.b16 %v423
        %v439 = vunpack.c.l.b16 %v424
        %v440 = vpack.c.b16 %v437, %v436
        %v441 = vpack.c.b16 %v439, %v438
        %vm444 = vcmask 261120
        %v446 = vsel %vm444, %v420, 0
        %448 = vmatprep.subr.bf16.mxu0 0
        %449 = vmatpush1.bf16.msra.mxu0 %v440
        %450 = vmatprep.subr.bf16.mxu0 0
        %451 = vmatpush1.bf16.msra.mxu0 %v441
        %452 = vmatprep.subr.bf16.mxu0 0
        %453 = vmatpush1.bf16.msra.mxu0 0
        %454 = vmatprep.subr.bf16.mxu0 0
        %455 = vmatpush1.bf16.msra.mxu0 0
        %456 = vmatprep.subr.bf16.mxu0 0
        %457 = vmatpush1.bf16.msra.mxu0 0
        %458 = vmatprep.subr.bf16.mxu0 0
        %459 = vmatpush1.bf16.msra.mxu0 0
        %460 = vmatprep.subr.bf16.mxu0 0
        %461 = vmatpush1.bf16.msra.mxu0 0
        %462 = vmatprep.subr.bf16.mxu0 0
        %463 = vmatpush1.bf16.msra.mxu0 0
        %464 = vmatprep.subr.bf16.mxu0 0
        %465 = vmatpush1.bf16.msra.mxu0 0
        %466 = vmatprep.subr.bf16.mxu0 0
        %467 = vmatpush1.bf16.msra.mxu0 0
        %468 = vmatprep.subr.bf16.mxu0 0
        %469 = vmatpush1.bf16.msra.mxu0 0
        %470 = vmatprep.subr.bf16.mxu0 0
        %471 = vmatpush1.bf16.msra.mxu0 0
        %472 = vmatprep.subr.bf16.mxu0 0
        %473 = vmatpush1.bf16.msra.mxu0 0
        %474 = vmatprep.subr.bf16.mxu0 0
        %475 = vmatpush1.bf16.msra.mxu0 0
        %476 = vmatprep.subr.bf16.mxu0 0
        %477 = vmatpush1.bf16.msra.mxu0 0
        %478 = vmatprep.subr.bf16.mxu0 0
        %479 = vmatpush1.bf16.msra.mxu0 0
        %480 = vmatprep.mubr.bf16.mxu0 0
        %481 = vmatmul.mubr.bf16.gmra.mrb[0].mxu0 %v446
        %v482 = vpop.f32.mrb[0].mxu0
        %v483 = vadd.f32 %v430, %v482
        %v484 = vpop.f32.mrb[0].mxu0
        %v485 = vpop.f32.mrb[0].mxu0
        %v486 = vpop.f32.mrb[0].mxu0
        %487 = vdwg.mxu0
        %v488 = vld [vmem:[%s361] sm:$0xff]
        %v489 = vpack.c.bf16 %v488, %v488
        %v490 = vld [vmem:[#allocation10] sm:$0xf]
        %v491 = vld [vmem:[#allocation10 + $0x4] sm:$0xf]
        %v492 = vld [vmem:[#allocation10 + $0x8] sm:$0xf]
        %v493 = vld [vmem:[#allocation10 + $0xc] sm:$0xf]
        %v494 = vld [vmem:[#allocation11] sm:$0x1]
        %v496 = vlaneseq
        %v497 = vshrl.u32 %v496, 7
        %v498 = vsub.s32 0, %v497
        %v499 = vrot.slane %v494, %v498
        %v505 = vunpack.c.l.b16 %v490
        %v506 = vunpack.c.l.b16 %v491
        %v507 = vunpack.c.l.b16 %v492
        %v508 = vunpack.c.l.b16 %v493
        %v509 = vpack.c.b16 %v506, %v505
        %v510 = vpack.c.b16 %v508, %v507
        %v514 = vsel %vm444, %v489, 0
        %516 = vmatprep.subr.bf16.mxu0 0
        %517 = vmatpush1.bf16.msra.mxu0 %v509
        %518 = vmatprep.subr.bf16.mxu0 0
        %519 = vmatpush1.bf16.msra.mxu0 %v510
        %520 = vmatprep.subr.bf16.mxu0 0
        %521 = vmatpush1.bf16.msra.mxu0 0
        %522 = vmatprep.subr.bf16.mxu0 0
        %523 = vmatpush1.bf16.msra.mxu0 0
        %524 = vmatprep.subr.bf16.mxu0 0
        %525 = vmatpush1.bf16.msra.mxu0 0
        %526 = vmatprep.subr.bf16.mxu0 0
        %527 = vmatpush1.bf16.msra.mxu0 0
        %528 = vmatprep.subr.bf16.mxu0 0
        %529 = vmatpush1.bf16.msra.mxu0 0
        %530 = vmatprep.subr.bf16.mxu0 0
        %531 = vmatpush1.bf16.msra.mxu0 0
        %532 = vmatprep.subr.bf16.mxu0 0
        %533 = vmatpush1.bf16.msra.mxu0 0
        %534 = vmatprep.subr.bf16.mxu0 0
        %535 = vmatpush1.bf16.msra.mxu0 0
        %536 = vmatprep.subr.bf16.mxu0 0
        %537 = vmatpush1.bf16.msra.mxu0 0
        %538 = vmatprep.subr.bf16.mxu0 0
        %539 = vmatpush1.bf16.msra.mxu0 0
        %540 = vmatprep.subr.bf16.mxu0 0
        %541 = vmatpush1.bf16.msra.mxu0 0
        %542 = vmatprep.subr.bf16.mxu0 0
        %543 = vmatpush1.bf16.msra.mxu0 0
        %544 = vmatprep.subr.bf16.mxu0 0
        %545 = vmatpush1.bf16.msra.mxu0 0
        %546 = vmatprep.subr.bf16.mxu0 0
        %547 = vmatpush1.bf16.msra.mxu0 0
        %548 = vmatprep.mubr.bf16.mxu0 0
        %549 = vmatmul.mubr.bf16.gmra.mrb[0].mxu0 %v514
        %v550 = vpop.f32.mrb[0].mxu0
        %v551 = vadd.f32 %v499, %v550
        %v552 = vpop.f32.mrb[0].mxu0
        %v553 = vpop.f32.mrb[0].mxu0
        %v554 = vpop.f32.mrb[0].mxu0
        %555 = vdwg.mxu0
        %556 = vxpose.xlu0.b32.start [1/16] %v483, 128
        %557 = vxpose.xlu0.b32.cont [2/16] 0.0, 128
        %558 = vxpose.xlu0.b32.cont [3/16] 0.0, 128
        %559 = vxpose.xlu0.b32.cont [4/16] 0.0, 128
        %560 = vxpose.xlu0.b32.cont [5/16] 0.0, 128
        %561 = vxpose.xlu0.b32.cont [6/16] 0.0, 128
        %562 = vxpose.xlu0.b32.cont [7/16] 0.0, 128
        %563 = vxpose.xlu0.b32.cont [8/16] 0.0, 128
        %564 = vxpose.xlu0.b32.cont [9/16] 0.0, 128
        %565 = vxpose.xlu0.b32.cont [10/16] 0.0, 128
        %566 = vxpose.xlu0.b32.cont [11/16] 0.0, 128
        %567 = vxpose.xlu0.b32.cont [12/16] 0.0, 128
        %568 = vxpose.xlu0.b32.cont [13/16] 0.0, 128
        %569 = vxpose.xlu0.b32.cont [14/16] 0.0, 128
        %570 = vxpose.xlu0.b32.cont [15/16] 0.0, 128
        %571 = vxpose.xlu0.b32.end [16/16] 0.0, 128
        %v572 = vpop.trf.xlu0
        %v573 = vpop.trf.xlu0
        %v574 = vpop.trf.xlu0
        %v575 = vpop.trf.xlu0
        %v576 = vpop.trf.xlu0
        %v577 = vpop.trf.xlu0
        %v578 = vpop.trf.xlu0
        %v579 = vpop.trf.xlu0
        %v580 = vpop.trf.xlu0
        %v581 = vpop.trf.xlu0
        %v582 = vpop.trf.xlu0
        %v583 = vpop.trf.xlu0
        %v584 = vpop.trf.xlu0
        %v585 = vpop.trf.xlu0
        %v586 = vpop.trf.xlu0
        %v587 = vpop.trf.xlu0
        %v588 = vpack.c.bf16 %v573, %v572
        %v590 = vunpack.c.l.b16 %v588
        %v591 = vunpack.c.h.b16 %v588
        %v592 = vpack.c.b16 %v590, %v590
        %v593 = vpack.c.b16 %v591, %v591
        %vm596 = vcmask 60416
        %597 = vst.msk [vmem:[%s410] sm:$0xf] %vm596, %v592
        %598 = vst.msk [vmem:[%s410 + $0x4] sm:$0xf] %vm596, %v593
        %v599 = vpack.c.bf16 %v551, %v551
        %vm600 = vcmask 125952
        %601 = vst.msk [vmem:[%s417] sm:$0xf] %vm600, %v599
        %s602 = sand.u32 %s195, 1
        %s603 = scalar_lea.sflag [#allocation4], %s602
        %s604 = sand.u32 %s195, 1
        %s605 = smul.addr %s604, 8
        %s606 = scalar_lea.vmem [#allocation13], %s605
        %s607 = sand.u32 %s223, 1
        %s608 = scalar_lea.sflag [#allocation15], %s607
        %s609 = sand.u32 %s223, 1
        %s610 = smul.addr %s609, 4
        %s611 = scalar_lea.vmem [#allocation14], %s610
        // Predicated region
        $region69: #{attention_head.2} parent=43 // pred_check
          %p612 = pneg %p205
        $region70: #{attention_head.2} parent=43 // pred_check_branch
          %614 = sbr.rel (%p612) target = $region72
        $region71: #{attention_head.2} parent=43 // pred_region
          %s616 = ssub.s32 128, 128
          %617 = vsyncadd %s603, %s616
          %s618 = smul.addr %s37, 2
          %s619 = sadd.s32 %s38, %s618
          %s620 = smul.addr %s619, 64
          %s621 = scalar_lea.hbm %s6, %s620
          %s622 = sshll.u32 %s606, 4
          %s623 = int_to_ptr.vmem [resolvable:$true] %s622
          %628 = dma.vmem_to_hbm [thread:$0]  %s623, 128, %s621, %s603, 64, 64, 4
        $region72: #{attention_head.2} parent=43 // pred_fallthru
          _
        // Predicated region
        $region73: #{attention_head.2} parent=43 // pred_check
          %p629 = pneg %p233
        $region74: #{attention_head.2} parent=43 // pred_check_branch
          %631 = sbr.rel (%p629) target = $region76
        $region75: #{attention_head.2} parent=43 // pred_region
          %s633 = ssub.s32 64, 64
          %634 = vsyncadd %s608, %s633
          %s635 = sadd.s32 %s38, %s37
          %s636 = smul.addr %s635, 64
          %s637 = scalar_lea.hbm %s7, %s636
          %s639 = sshll.u32 %s611, 4
          %s640 = int_to_ptr.vmem [resolvable:$true] %s639
          %642 = dma.vmem_to_hbm [thread:$0]  %s640, 64, %s637, %s608
        $region76: #{attention_head.2} parent=43 // pred_fallthru
          _
      $region44: #{attention_head.2} parent=5 // pred_fallthru
        _
      %p643 = scmp.le.s32.totalorder 2, %s28
      // Predicated region
      $region77: #{attention_head.2} parent=5 // pred_check
        %p644 = pneg %p643
      $region78: #{attention_head.2} parent=5 // pred_check_branch
        %646 = sbr.rel (%p644) target = $region80
      $region79: #{attention_head.2} parent=5 // pred_region
        %s647 = ssub.s32 %s28, 2
        // Predicated region
        $region81: #{attention_head.2} parent=79 // pred_check
          %p648 = pneg %p211
        $region82: #{attention_head.2} parent=79 // pred_check_branch
          %650 = sbr.rel (%p648) target = $region84
        $region83: #{attention_head.2} parent=79 // pred_region
          %s651 = sand.u32 %s196, 1
          %s652 = scalar_lea.sflag [#allocation4], %s651
          %s653 = sand.u32 %s196, 1
          %s654 = smul.addr %s653, 8
          %s655 = scalar_lea.vmem [#allocation13], %s654
          %656 = dma.done %s652, 128
        $region84: #{attention_head.2} parent=79 // pred_fallthru
          _
        // Predicated region
        $region85: #{attention_head.2} parent=79 // pred_check
          %p657 = pneg %p239
        $region86: #{attention_head.2} parent=79 // pred_check_branch
          %659 = sbr.rel (%p657) target = $region88
        $region87: #{attention_head.2} parent=79 // pred_region
          %s660 = sand.u32 %s224, 1
          %s661 = scalar_lea.sflag [#allocation15], %s660
          %s662 = sand.u32 %s224, 1
          %s663 = smul.addr %s662, 4
          %s664 = scalar_lea.vmem [#allocation14], %s663
          %665 = dma.done %s661, 64
        $region88: #{attention_head.2} parent=79 // pred_fallthru
          _
      $region80: #{attention_head.2} parent=5 // pred_fallthru
        _
    $region6: #{attention_head.2} parent=1 // loop_footer
      %s32 = sadd.s32 1, %s28
    $region7: #{attention_head.2} parent=1 // loop_footer_branch
      %27 = sbr.rel target = $region3
    $region8: #{attention_head.2} parent=1 // loop_exit
      _
    %666 = vsyncpa [#allocation3], 1
    %s667 = scalar_lea.sflag [#allocation3], 1
    %668 = vsyncpa %s667, 1
    %669 = vsyncpa [#allocation6], 1
    %s670 = scalar_lea.sflag [#allocation6], 1
    %671 = vsyncpa %s670, 1
    %672 = vsyncpa [#allocation9], 1
    %673 = vsyncpa [#allocation12], 1
    %674 = vsyncpa [#allocation4], 1
    %s675 = scalar_lea.sflag [#allocation4], 1
    %676 = vsyncpa %s675, 1
    %677 = vsyncpa [#allocation15], 1
    %s678 = scalar_lea.sflag [#allocation15], 1
    %679 = vsyncpa %s678, 1

</llo_original>
